<compile_context>
chip_gen: v7x
topology: tpu7x:2x2x1
jax: 0.10.0
libtpu: 0.0.40
codegen_flags: <defaults>
</compile_context>

<pallas_src>
import math

import jax
import jax.numpy as jnp
from jax import lax
from jax.experimental import pallas as pl
from jax.experimental.pallas import tpu as pltpu


def _vmem_limit_bytes(default=48 * 1024 * 1024):
    """~78% of physical VMEM: ~48 MiB on v7x (64 MiB/TC), ~100 MiB on v5e/v6e
    (128 MiB) — leaves headroom for compiler-internal scratch."""
    try:
        cap = getattr(pltpu.get_tpu_info(), "vmem_capacity_bytes", None)
        if cap:
            return int(cap * 0.78)
    except Exception:
        pass
    return default


def _pick_batch_tile(B, P, target_rows=256):
    """Largest divisor TB of B with TB*P <= target_rows (fills the 256-wide MXU
    on v6e/v7x).  Keep >= 2 batch blocks when B > 1 so both v7x TensorCores get
    work; fall back to TB = B if TB*P would violate the sublane constraint."""
    tb = 1
    for cand in range(1, B + 1):
        if B % cand == 0 and cand * P <= target_rows:
            tb = cand
    if B > 1 and B // tb == 1:
        for cand in range(tb - 1, 0, -1):
            if B % cand == 0:
                tb = cand
                break
    if (tb * P) % 8 != 0 and tb != B:
        tb = B
    return tb


def make_layer_kernel(num_layers, num_heads, d_head, act_type, TB, P):
    F = num_heads * d_head
    bf16 = jnp.bfloat16

    def to_heads(x2d):
        # (TB*P, F) head-major columns -> (TB*H, P, dh); minor dim preserved.
        x4 = x2d.reshape(TB, P, num_heads, d_head)
        x4 = jnp.swapaxes(x4, 1, 2)
        return x4.reshape(TB * num_heads, P, d_head)

    def from_heads(x3d):
        # (TB*H, P, dh) -> (TB*P, F) head-major (matches 'b i q h -> b q (i h)').
        x4 = x3d.reshape(TB, num_heads, P, d_head)
        x4 = jnp.swapaxes(x4, 1, 2)
        return x4.reshape(TB * P, F)

    def kernel(x_emb_ref, wpos_ref, wqkv_ref, wo_ref, win_ref, bin_ref,
               wout_ref, bout_ref, resid_out_ref, resid_ref):
        # grid = (batch_block, layer); residual carried across layers in VMEM.
        l = pl.program_id(1)

        @pl.when(l == 0)
        def _init_residual():
            resid_ref[...] = x_emb_ref[...] + wpos_ref[...]   # embed + pos-embed

        x = resid_ref[...]                                    # (TB*P, D) f32

        # ---- Attention: fused QKV projection (bf16 MXU, f32 accumulate) ----
        qkv = jnp.dot(x.astype(bf16), wqkv_ref[...],
                      preferred_element_type=jnp.float32)     # (TB*P, 3F)
        qkv = qkv.astype(bf16)                                # bf16 score/AV operands
        q = to_heads(qkv[:, 0:F])                             # 1/sqrt(dh) folded into W_Q
        k = to_heads(qkv[:, F:2 * F])
        v = to_heads(qkv[:, 2 * F:3 * F])

        # TODO(synk): for long contexts, tile over the KV axis (flash-style
        # online softmax) instead of materializing (TB*H, P, P) scores.
        s = jnp.einsum('nqd,nkd->nqk', q, k,
                       preferred_element_type=jnp.float32)    # (TB*H, P, P) f32
        q_idx = lax.broadcasted_iota(jnp.int32, (P, P), 0)
        k_idx = lax.broadcasted_iota(jnp.int32, (P, P), 1)
        s = jnp.where((k_idx <= q_idx)[None, :, :], s, -1e10)
        s = s - jnp.max(s, axis=-1, keepdims=True)
        e = jnp.exp(s)
        a = e * pl.reciprocal(jnp.sum(e, axis=-1, keepdims=True), approx=True)

        z = jnp.einsum('nqk,nkd->nqd', a.astype(bf16), v,
                       preferred_element_type=jnp.float32)    # (TB*H, P, dh) f32
        z = from_heads(z.astype(bf16))                        # (TB*P, F) bf16
        attn_out = jnp.dot(z, wo_ref[...], preferred_element_type=jnp.float32)
        x = x + attn_out

        # ---- MLP ----
        pre = jnp.dot(x.astype(bf16), win_ref[...],
                      preferred_element_type=jnp.float32) + bin_ref[...]
        if act_type == 'ReLU':
            post = jnp.maximum(pre, 0.0)
        else:  # 'GeLU' — torch F.gelu uses the exact erf formulation.
            post = jax.nn.gelu(pre, approximate=False)
        mlp_out = jnp.dot(post.astype(bf16), wout_ref[...],
                          preferred_element_type=jnp.float32) + bout_ref[...]
        x = x + mlp_out

        resid_ref[...] = x                                    # carry to next layer

        @pl.when(l == num_layers - 1)
        def _final():
            resid_out_ref[...] = x

    return kernel


def unembed_kernel(x_ref, wu_ref, out_ref):
    # Vocab-tiled logits: lane-dense 128-multiple output blocks.
    out_ref[...] = jnp.dot(x_ref[...].astype(jnp.bfloat16), wu_ref[...],
                           preferred_element_type=jnp.float32)


def transformer_forward(tokens, params, config):
    B, P = tokens.shape
    D = config['d_model']
    V = config['d_vocab']
    H = config['num_heads']
    dh = config['d_head']
    M = config['d_mlp']
    L = config['num_layers']
    F = H * dh
    f32, bf16 = jnp.float32, jnp.bfloat16

    TB = _pick_batch_tile(B, P)
    NB = B // TB
    Vpad = ((V + 127) // 128) * 128
    TV = next(t for t in (2048, 1024, 512, 256, 128) if Vpad % t == 0)
    vmem_limit = _vmem_limit_bytes()
    deep_pipeline = vmem_limit >= 96 * 1024 * 1024   # 3-deep weight buffers on 128-MiB parts

    # Glue: embedding lookup (W_E[:, tokens]) + positional tile, plain JAX.
    x_emb = params['W_E'].T[tokens].reshape(B * P, D).astype(f32)
    wpos = jnp.tile(params['W_pos'][:P], (TB, 1)).astype(f32)          # (TB*P, D)

    # Weight packing: fused QKV (Q pre-scaled by 1/sqrt(dh)), (K, N) orientation, bf16.
    inv_sqrt_dh = 1.0 / math.sqrt(dh)
    wq = (params['W_Q'] * inv_sqrt_dh).reshape(L, F, D)
    wk = params['W_K'].reshape(L, F, D)
    wv = params['W_V'].reshape(L, F, D)
    wqkv_t = jnp.transpose(jnp.concatenate([wq, wk, wv], axis=1), (0, 2, 1)).astype(bf16)  # (L, D, 3F)
    wo_t = jnp.transpose(params['W_O'], (0, 2, 1)).astype(bf16)        # (L, F, D)
    win_t = jnp.transpose(params['W_in'], (0, 2, 1)).astype(bf16)      # (L, D, M)
    wout_t = jnp.transpose(params['W_out'], (0, 2, 1)).astype(bf16)    # (L, M, D)
    b_in = params['b_in'].reshape(L, 1, M).astype(f32)
    b_out = params['b_out'].reshape(L, 1, D).astype(f32)
    wu = jnp.pad(params['W_U'], ((0, 0), (0, Vpad - V))).astype(bf16)  # (D, Vpad)

    def wspec(shape, imap):
        # Deeper pipelining on large per-layer weight blocks when VMEM allows.
        if deep_pipeline:
            try:
                return pl.BlockSpec(shape, imap, pipeline_mode=pl.Buffered(3))
            except TypeError:
                pass
        return pl.BlockSpec(shape, imap)

    layer_kernel = make_layer_kernel(L, H, dh, config['act_type'], TB, P)

    grid_spec = pltpu.PrefetchScalarGridSpec(
        num_scalar_prefetch=0,
        grid=(NB, L),                       # batch-blocks "parallel", layers sequential
        in_specs=[
            pl.BlockSpec((TB * P, D), lambda b, l: (b, 0)),            # x_emb
            pl.BlockSpec((TB * P, D), lambda b, l: (0, 0)),            # W_pos tile (resident)
            wspec((None, D, 3 * F), lambda b, l: (l, 0, 0)),           # W_QKV (streamed per layer)
            wspec((None, F, D), lambda b, l: (l, 0, 0)),               # W_O
            wspec((None, D, M), lambda b, l: (l, 0, 0)),               # W_in
            pl.BlockSpec((None, 1, M), lambda b, l: (l, 0, 0)),        # b_in
            wspec((None, M, D), lambda b, l: (l, 0, 0)),               # W_out
            pl.BlockSpec((None, 1, D), lambda b, l: (l, 0, 0)),        # b_out
        ],
        out_specs=pl.BlockSpec((TB * P, D), lambda b, l: (b, 0)),      # final residual stream
        scratch_shapes=[pltpu.VMEM((TB * P, D), jnp.float32)],
    )

    # Advisory cost estimate for the XLA scheduler.
    flops_layer = (2 * P * D * 3 * F) + 2 * (2 * H * P * P * dh) + (2 * P * F * D) + 2 * (2 * P * D * M)
    flops = B * L * flops_layer
    transcendentals = B * L * H * P * P + (B * L * P * M if config['act_type'] == 'GeLU' else 0)
    bytes_accessed = sum(int(a.size) * a.dtype.itemsize for a in
                         (x_emb, wpos, wqkv_t, wo_t, win_t, b_in, wout_t, b_out))
    bytes_accessed += B * P * D * 4

    resid_final = pl.pallas_call(
        layer_kernel,
        out_shape=jax.ShapeDtypeStruct((B * P, D), jnp.float32),
        grid_spec=grid_spec,
        compiler_params=pltpu.CompilerParams(
            dimension_semantics=("parallel", "arbitrary"),
            vmem_limit_bytes=vmem_limit),
        cost_estimate=pl.CostEstimate(flops=int(flops),
                                      transcendentals=int(transcendentals),
                                      bytes_accessed=int(bytes_accessed)),
    )(x_emb, wpos, wqkv_t, wo_t, win_t, b_in, wout_t, b_out)

    # ---- Unembed: separate vocab-tiled kernel (W_U + f32 logits never share
    #      VMEM with the layer loop; output blocks stay lane-dense). ----
    logits_pad = pl.pallas_call(
        unembed_kernel,
        out_shape=jax.ShapeDtypeStruct((B * P, Vpad), jnp.float32),
        grid_spec=pltpu.PrefetchScalarGridSpec(
            num_scalar_prefetch=0,
            grid=(NB, Vpad // TV),
            in_specs=[pl.BlockSpec((TB * P, D), lambda b, v: (b, 0)),
                      pl.BlockSpec((D, TV), lambda b, v: (0, v))],
            out_specs=pl.BlockSpec((TB * P, TV), lambda b, v: (b, v)),
        ),
        compiler_params=pltpu.CompilerParams(
            dimension_semantics=("parallel", "parallel"),
            vmem_limit_bytes=vmem_limit),
        cost_estimate=pl.CostEstimate(
            flops=int(2 * B * P * D * Vpad), transcendentals=0,
            bytes_accessed=int(B * P * D * 4 + D * Vpad * 2 + B * P * Vpad * 4)),
    )(resid_final, wu)

    return logits_pad[:, :V].reshape(B, P, V)


def reference_forward(tokens, params, config):
    """Pure-JAX f32 reference replicating the PyTorch forward math exactly."""
    H, dh = config['num_heads'], config['d_head']
    x = params['W_E'].T[tokens] + params['W_pos'][:tokens.shape[1]][None]
    P = tokens.shape[1]
    mask = jnp.tril(jnp.ones((P, P), jnp.float32))
    for l in range(config['num_layers']):
        k = jnp.einsum('ihd,bpd->biph', params['W_K'][l], x)
        q = jnp.einsum('ihd,bpd->biph', params['W_Q'][l], x)
        v = jnp.einsum('ihd,bpd->biph', params['W_V'][l], x)
        s = jnp.einsum('biph,biqh->biqp', k, q)
        s = s * mask - 1e10 * (1 - mask)
        a = jax.nn.softmax(s / math.sqrt(dh), axis=-1)
        z = jnp.einsum('biph,biqp->biqh', v, a)          # (b, i, q, h)
        z_flat = jnp.transpose(z, (0, 2, 1, 3)).reshape(z.shape[0], P, H * dh)
        attn_out = jnp.einsum('df,bqf->bqd', params['W_O'][l], z_flat)
        x = x + attn_out
        pre = jnp.einsum('md,bpd->bpm', params['W_in'][l], x) + params['b_in'][l]
        post = (jnp.maximum(pre, 0.0) if config['act_type'] == 'ReLU'
                else jax.nn.gelu(pre, approximate=False))
        mlp_out = jnp.einsum('dm,bpm->bpd', params['W_out'][l], post) + params['b_out'][l]
        x = x + mlp_out
    return x @ params['W_U']


if __name__ == "__main__":
    # Small config consistent with the module's __init__
    config = dict(d_vocab=16, d_model=32, n_ctx=8, d_head=8, num_heads=4,
                  d_mlp=64, num_layers=2, act_type='ReLU')
    B, P = 2, config['n_ctx']
    D, V = config['d_model'], config['d_vocab']
    H, dh, M, L = config['num_heads'], config['d_head'], config['d_mlp'], config['num_layers']

    key = jax.random.PRNGKey(0)
    ks = jax.random.split(key, 12)
    f32 = jnp.float32
    params = {
        'W_E':   jax.random.normal(ks[0], (D, V), f32) / math.sqrt(D),
        'W_pos': jax.random.normal(ks[1], (config['n_ctx'], D), f32) / math.sqrt(D),
        'W_K':   jax.random.normal(ks[2], (L, H, dh, D), f32) / math.sqrt(D),
        'W_Q':   jax.random.normal(ks[3], (L, H, dh, D), f32) / math.sqrt(D),
        'W_V':   jax.random.normal(ks[4], (L, H, dh, D), f32) / math.sqrt(D),
        'W_O':   jax.random.normal(ks[5], (L, D, H * dh), f32) / math.sqrt(D),
        'W_in':  jax.random.normal(ks[6], (L, M, D), f32) / math.sqrt(D),
        'b_in':  0.1 * jax.random.normal(ks[7], (L, M), f32),
        'W_out': jax.random.normal(ks[8], (L, D, M), f32) / math.sqrt(D),
        'b_out': 0.1 * jax.random.normal(ks[9], (L, D), f32),
        'W_U':   jax.random.normal(ks[10], (D, V), f32) / math.sqrt(V),
    }
    tokens = jax.random.randint(ks[11], (B, P), 0, V, dtype=jnp.int32)

    logits = transformer_forward(tokens, params, config)
    logits = jax.block_until_ready(logits)

    ref = reference_forward(tokens, params, config)
    max_diff = float(jnp.max(jnp.abs(logits - ref)))
    assert logits.shape == (B, P, V), logits.shape
    # Matmul operands are bf16 (f32 accumulation), so compare against the f32
    # reference with a tolerance covering bf16 rounding of weights/activations.
    assert max_diff < 1e-1, f"max diff vs reference too large: {max_diff}"
    print("KERNEL_OK")
</pallas_src>

<mosaic_0001>
module attributes {stable_mosaic.version = 11 : i64} {
  func.func @kernel(%arg0: i32, %arg1: i32, %arg2: memref<8x32xf32, #tpu.memory_space<vmem>>, %arg3: memref<8x32xf32, #tpu.memory_space<vmem>>, %arg4: memref<1x32x96xbf16, #tpu.memory_space<vmem>>, %arg5: memref<1x32x32xbf16, #tpu.memory_space<vmem>>, %arg6: memref<1x32x64xbf16, #tpu.memory_space<vmem>>, %arg7: memref<1x1x64xf32, #tpu.memory_space<vmem>>, %arg8: memref<1x64x32xbf16, #tpu.memory_space<vmem>>, %arg9: memref<1x1x32xf32, #tpu.memory_space<vmem>>, %arg10: memref<8x32xf32, #tpu.memory_space<vmem>>, %arg11: memref<8x32xf32, #tpu.memory_space<vmem>>) attributes {dimension_semantics = [#tpu.dimension_semantics<parallel>, #tpu.dimension_semantics<arbitrary>], iteration_bounds = array<i64: 2, 2>, scalar_prefetch = 0 : i64, scratch_operands = 1 : i64, tpu.core_type = #tpu.core_type<tc>, window_params = [{transform_indices = @transform_0, window_bounds = array<i64: 8, 32>}, {pipeline_mode = #tpu.pipeline_mode<synchronous>, transform_indices = @transform_1, window_bounds = array<i64: 8, 32>}, {transform_indices = @transform_2, window_bounds = array<i64: 1, 32, 96>}, {transform_indices = @transform_3, window_bounds = array<i64: 1, 32, 32>}, {transform_indices = @transform_4, window_bounds = array<i64: 1, 32, 64>}, {transform_indices = @transform_5, window_bounds = array<i64: 1, 1, 64>}, {transform_indices = @transform_6, window_bounds = array<i64: 1, 64, 32>}, {transform_indices = @transform_7, window_bounds = array<i64: 1, 1, 32>}, {transform_indices = @transform_8, window_bounds = array<i64: 8, 32>}]} {
    %c0_i32 = arith.constant 0 : i32
    %0 = arith.cmpi eq, %arg1, %c0_i32 : i32
    %1 = arith.extui %0 : i1 to i32
    %c0_i32_0 = arith.constant 0 : i32
    %2 = arith.cmpi ne, %1, %c0_i32_0 : i32
    scf.if %2 {
      %c0_32 = arith.constant 0 : index
      %c0_33 = arith.constant 0 : index
      %73 = vector.load %arg2[%c0_32, %c0_33] : memref<8x32xf32, #tpu.memory_space<vmem>>, vector<8x32xf32>
      %c0_34 = arith.constant 0 : index
      %c0_35 = arith.constant 0 : index
      %74 = vector.load %arg3[%c0_34, %c0_35] : memref<8x32xf32, #tpu.memory_space<vmem>>, vector<8x32xf32>
      %75 = arith.addf %73, %74 : vector<8x32xf32>
      %c0_36 = arith.constant 0 : index
      %c0_37 = arith.constant 0 : index
      %76 = vector.load %arg11[%c0_36, %c0_37] : memref<8x32xf32, #tpu.memory_space<vmem>>, vector<8x32xf32>
      tpu.vector_store %arg11[%c0_36, %c0_37], %75 {strides = array<i32>} : memref<8x32xf32, #tpu.memory_space<vmem>>, vector<8x32xf32>,
    } else {
    }
    %c0 = arith.constant 0 : index
    %c0_1 = arith.constant 0 : index
    %3 = vector.load %arg11[%c0, %c0_1] : memref<8x32xf32, #tpu.memory_space<vmem>>, vector<8x32xf32>
    %4 = arith.truncf %3 : vector<8x32xf32> to vector<8x32xbf16>
    %c0_2 = arith.constant 0 : index
    %c0_3 = arith.constant 0 : index
    %c0_4 = arith.constant 0 : index
    %5 = vector.load %arg4[%c0_2, %c0_3, %c0_4] : memref<1x32x96xbf16, #tpu.memory_space<vmem>>, vector<1x32x96xbf16>
    %6 = vector.shape_cast %5 : vector<1x32x96xbf16> to vector<32x96xbf16>
    %cst = arith.constant dense<0.000000e+00> : vector<8x96xf32>
    %7 = tpu.matmul %4, %6, %cst {dimension_numbers = #tpu.dot_dimension_numbers<[1], [0], [0], [1], [0, 0, 1, 1], [], []>} : vector<8x32xbf16>, vector<32x96xbf16>, vector<8x96xf32> -> vector<8x96xf32>
    %8 = arith.truncf %7 : vector<8x96xf32> to vector<8x96xbf16>
    %9 = vector.extract_strided_slice %8 {offsets = [0, 0], sizes = [8, 32], strides = [1, 1]} : vector<8x96xbf16> to vector<8x32xbf16>
    %10 = vector.shape_cast %9 : vector<8x32xbf16> to vector<1x8x4x8xbf16>
    %11 = tpu.transpose %10, [0, 2, 1, 3] : vector<1x8x4x8xbf16> -> vector<1x4x8x8xbf16>
    %12 = vector.shape_cast %11 : vector<1x4x8x8xbf16> to vector<4x8x8xbf16>
    %13 = vector.extract_strided_slice %8 {offsets = [0, 32], sizes = [8, 32], strides = [1, 1]} : vector<8x96xbf16> to vector<8x32xbf16>
    %14 = vector.shape_cast %13 : vector<8x32xbf16> to vector<1x8x4x8xbf16>
    %15 = tpu.transpose %14, [0, 2, 1, 3] : vector<1x8x4x8xbf16> -> vector<1x4x8x8xbf16>
    %16 = vector.shape_cast %15 : vector<1x4x8x8xbf16> to vector<4x8x8xbf16>
    %17 = vector.extract_strided_slice %8 {offsets = [0, 64], sizes = [8, 32], strides = [1, 1]} : vector<8x96xbf16> to vector<8x32xbf16>
    %18 = vector.shape_cast %17 : vector<8x32xbf16> to vector<1x8x4x8xbf16>
    %19 = tpu.transpose %18, [0, 2, 1, 3] : vector<1x8x4x8xbf16> -> vector<1x4x8x8xbf16>
    %20 = vector.shape_cast %19 : vector<1x4x8x8xbf16> to vector<4x8x8xbf16>
    "tpu.trace_start"() <{level = 10 : i32, message = "nqd,nkd->nqk"}> : () -> ()
    %cst_5 = arith.constant dense<0.000000e+00> : vector<4x8x8xf32>
    %21 = tpu.matmul %12, %16, %cst_5 {dimension_numbers = #tpu.dot_dimension_numbers<[2], [2], [1], [1], [0, 0, 0, 1, 1, 1], [0], [0]>} : vector<4x8x8xbf16>, vector<4x8x8xbf16>, vector<4x8x8xf32> -> vector<4x8x8xf32>
    "tpu.trace_stop"() : () -> ()
    %22 = tpu.iota {dimensions = array<i32: 0>} : vector<8x8xi32>
    %23 = tpu.iota {dimensions = array<i32: 1>} : vector<8x8xi32>
    %24 = arith.cmpi sle, %23, %22 : vector<8x8xi32>
    %25 = vector.shape_cast %24 : vector<8x8xi1> to vector<1x8x8xi1>
    %cst_6 = arith.constant -1.000000e+10 : f32
    %26 = vector.shape_cast %25 : vector<1x8x8xi1> to vector<1x8x8xi1>
    %27 = vector.broadcast %26 : vector<1x8x8xi1> to vector<4x8x8xi1>
    %28 = vector.broadcast %cst_6 : f32 to vector<4x8x8xf32>
    %29 = arith.select %27, %21, %28 : vector<4x8x8xi1>, vector<4x8x8xf32>
    %cst_7 = arith.constant dense<0xFF800000> : vector<4x8xf32>
    %30 = vector.multi_reduction <maximumf>, %29, %cst_7 [2] : vector<4x8x8xf32> to vector<4x8xf32>
    %31 = vector.shape_cast %30 : vector<4x8xf32> to vector<4x8x1xf32>
    %32 = vector.broadcast %31 : vector<4x8x1xf32> to vector<4x8x8xf32>
    %33 = arith.subf %29, %32 : vector<4x8x8xf32>
    %34 = math.exp %33 : vector<4x8x8xf32>
    %cst_8 = arith.constant dense<0.000000e+00> : vector<4x8xf32>
    %35 = vector.multi_reduction <add>, %34, %cst_8 [2] : vector<4x8x8xf32> to vector<4x8xf32>
    %36 = vector.shape_cast %35 : vector<4x8xf32> to vector<4x8x1xf32>
    %37 = tpu.reciprocal %36 {approx = true} : vector<4x8x1xf32> -> vector<4x8x1xf32>
    %38 = vector.broadcast %37 : vector<4x8x1xf32> to vector<4x8x8xf32>
    %39 = arith.mulf %34, %38 : vector<4x8x8xf32>
    %40 = arith.truncf %39 : vector<4x8x8xf32> to vector<4x8x8xbf16>
    "tpu.trace_start"() <{level = 10 : i32, message = "nqk,nkd->nqd"}> : () -> ()
    %cst_9 = arith.constant dense<0.000000e+00> : vector<4x8x8xf32>
    %41 = tpu.matmul %40, %20, %cst_9 {dimension_numbers = #tpu.dot_dimension_numbers<[2], [1], [1], [2], [0, 0, 0, 1, 1, 2], [0], [0]>} : vector<4x8x8xbf16>, vector<4x8x8xbf16>, vector<4x8x8xf32> -> vector<4x8x8xf32>
    "tpu.trace_stop"() : () -> ()
    %42 = arith.truncf %41 : vector<4x8x8xf32> to vector<4x8x8xbf16>
    %43 = vector.shape_cast %42 : vector<4x8x8xbf16> to vector<1x4x8x8xbf16>
    %44 = tpu.transpose %43, [0, 2, 1, 3] : vector<1x4x8x8xbf16> -> vector<1x8x4x8xbf16>
    %45 = vector.shape_cast %44 : vector<1x8x4x8xbf16> to vector<8x32xbf16>
    %c0_10 = arith.constant 0 : index
    %c0_11 = arith.constant 0 : index
    %c0_12 = arith.constant 0 : index
    %46 = vector.load %arg5[%c0_10, %c0_11, %c0_12] : memref<1x32x32xbf16, #tpu.memory_space<vmem>>, vector<1x32x32xbf16>
    %47 = vector.shape_cast %46 : vector<1x32x32xbf16> to vector<32x32xbf16>
    %cst_13 = arith.constant dense<0.000000e+00> : vector<8x32xf32>
    %48 = tpu.matmul %45, %47, %cst_13 {dimension_numbers = #tpu.dot_dimension_numbers<[1], [0], [0], [1], [0, 0, 1, 1], [], []>} : vector<8x32xbf16>, vector<32x32xbf16>, vector<8x32xf32> -> vector<8x32xf32>
    %49 = arith.addf %3, %48 : vector<8x32xf32>
    %50 = arith.truncf %49 : vector<8x32xf32> to vector<8x32xbf16>
    %c0_14 = arith.constant 0 : index
    %c0_15 = arith.constant 0 : index
    %c0_16 = arith.constant 0 : index
    %51 = vector.load %arg6[%c0_14, %c0_15, %c0_16] : memref<1x32x64xbf16, #tpu.memory_space<vmem>>, vector<1x32x64xbf16>
    %52 = vector.shape_cast %51 : vector<1x32x64xbf16> to vector<32x64xbf16>
    %cst_17 = arith.constant dense<0.000000e+00> : vector<8x64xf32>
    %53 = tpu.matmul %50, %52, %cst_17 {dimension_numbers = #tpu.dot_dimension_numbers<[1], [0], [0], [1], [0, 0, 1, 1], [], []>} : vector<8x32xbf16>, vector<32x64xbf16>, vector<8x64xf32> -> vector<8x64xf32>
    %c0_18 = arith.constant 0 : index
    %c0_19 = arith.constant 0 : index
    %c0_20 = arith.constant 0 : index
    %54 = vector.load %arg7[%c0_18, %c0_19, %c0_20] : memref<1x1x64xf32, #tpu.memory_space<vmem>>, vector<1x1x64xf32>
    %55 = vector.shape_cast %54 : vector<1x1x64xf32> to vector<1x64xf32>
    %56 = vector.broadcast %55 : vector<1x64xf32> to vector<8x64xf32>
    %57 = arith.addf %53, %56 : vector<8x64xf32>
    %cst_21 = arith.constant 0.000000e+00 : f32
    %58 = vector.broadcast %cst_21 : f32 to vector<8x64xf32>
    %59 = arith.maximumf %57, %58 : vector<8x64xf32>
    %60 = arith.truncf %59 : vector<8x64xf32> to vector<8x64xbf16>
    %c0_22 = arith.constant 0 : index
    %c0_23 = arith.constant 0 : index
    %c0_24 = arith.constant 0 : index
    %61 = vector.load %arg8[%c0_22, %c0_23, %c0_24] : memref<1x64x32xbf16, #tpu.memory_space<vmem>>, vector<1x64x32xbf16>
    %62 = vector.shape_cast %61 : vector<1x64x32xbf16> to vector<64x32xbf16>
    %cst_25 = arith.constant dense<0.000000e+00> : vector<8x32xf32>
    %63 = tpu.matmul %60, %62, %cst_25 {dimension_numbers = #tpu.dot_dimension_numbers<[1], [0], [0], [1], [0, 0, 1, 1], [], []>} : vector<8x64xbf16>, vector<64x32xbf16>, vector<8x32xf32> -> vector<8x32xf32>
    %c0_26 = arith.constant 0 : index
    %c0_27 = arith.constant 0 : index
    %c0_28 = arith.constant 0 : index
    %64 = vector.load %arg9[%c0_26, %c0_27, %c0_28] : memref<1x1x32xf32, #tpu.memory_space<vmem>>, vector<1x1x32xf32>
    %65 = vector.shape_cast %64 : vector<1x1x32xf32> to vector<1x32xf32>
    %66 = vector.broadcast %65 : vector<1x32xf32> to vector<8x32xf32>
    %67 = arith.addf %63, %66 : vector<8x32xf32>
    %68 = arith.addf %49, %67 : vector<8x32xf32>
    %c0_29 = arith.constant 0 : index
    %c0_30 = arith.constant 0 : index
    %69 = vector.load %arg11[%c0_29, %c0_30] : memref<8x32xf32, #tpu.memory_space<vmem>>, vector<8x32xf32>
    tpu.vector_store %arg11[%c0_29, %c0_30], %68 {strides = array<i32>} : memref<8x32xf32, #tpu.memory_space<vmem>>, vector<8x32xf32>,
    %c1_i32 = arith.constant 1 : i32
    %70 = arith.cmpi eq, %arg1, %c1_i32 : i32
    %71 = arith.extui %70 : i1 to i32
    %c0_i32_31 = arith.constant 0 : i32
    %72 = arith.cmpi ne, %71, %c0_i32_31 : i32
    scf.if %72 {
      %c0_32 = arith.constant 0 : index
      %c0_33 = arith.constant 0 : index
      %73 = vector.load %arg10[%c0_32, %c0_33] : memref<8x32xf32, #tpu.memory_space<vmem>>, vector<8x32xf32>
      tpu.vector_store %arg10[%c0_32, %c0_33], %68 {strides = array<i32>} : memref<8x32xf32, #tpu.memory_space<vmem>>, vector<8x32xf32>,
    } else {
    }
    return
  }
  func.func @transform_0(%arg0: i32, %arg1: i32) -> (i32, i32) {
    %c0_i32 = arith.constant 0 : i32
    %c0_i32_0 = arith.constant 0 : i32
    return %arg0, %c0_i32 : i32, i32
  }
  func.func @transform_1(%arg0: i32, %arg1: i32) -> (i32, i32) {
    %c0_i32 = arith.constant 0 : i32
    %c0_i32_0 = arith.constant 0 : i32
    %c0_i32_1 = arith.constant 0 : i32
    return %c0_i32, %c0_i32_0 : i32, i32
  }
  func.func @transform_2(%arg0: i32, %arg1: i32) -> (i32, i32, i32) {
    %c0_i32 = arith.constant 0 : i32
    %c0_i32_0 = arith.constant 0 : i32
    %c0_i32_1 = arith.constant 0 : i32
    return %arg1, %c0_i32, %c0_i32_0 : i32, i32, i32
  }
  func.func @transform_3(%arg0: i32, %arg1: i32) -> (i32, i32, i32) {
    %c0_i32 = arith.constant 0 : i32
    %c0_i32_0 = arith.constant 0 : i32
    %c0_i32_1 = arith.constant 0 : i32
    return %arg1, %c0_i32, %c0_i32_0 : i32, i32, i32
  }
  func.func @transform_4(%arg0: i32, %arg1: i32) -> (i32, i32, i32) {
    %c0_i32 = arith.constant 0 : i32
    %c0_i32_0 = arith.constant 0 : i32
    %c0_i32_1 = arith.constant 0 : i32
    return %arg1, %c0_i32, %c0_i32_0 : i32, i32, i32
  }
  func.func @transform_5(%arg0: i32, %arg1: i32) -> (i32, i32, i32) {
    %c0_i32 = arith.constant 0 : i32
    %c0_i32_0 = arith.constant 0 : i32
    %c0_i32_1 = arith.constant 0 : i32
    return %arg1, %c0_i32, %c0_i32_0 : i32, i32, i32
  }
  func.func @transform_6(%arg0: i32, %arg1: i32) -> (i32, i32, i32) {
    %c0_i32 = arith.constant 0 : i32
    %c0_i32_0 = arith.constant 0 : i32
    %c0_i32_1 = arith.constant 0 : i32
    return %arg1, %c0_i32, %c0_i32_0 : i32, i32, i32
  }
  func.func @transform_7(%arg0: i32, %arg1: i32) -> (i32, i32, i32) {
    %c0_i32 = arith.constant 0 : i32
    %c0_i32_0 = arith.constant 0 : i32
    %c0_i32_1 = arith.constant 0 : i32
    return %arg1, %c0_i32, %c0_i32_0 : i32, i32, i32
  }
  func.func @transform_8(%arg0: i32, %arg1: i32) -> (i32, i32) {
    %c0_i32 = arith.constant 0 : i32
    %c0_i32_0 = arith.constant 0 : i32
    return %arg0, %c0_i32 : i32, i32
  }
}

</mosaic_0001>

<llo_original>
// kernel: tpu_custom_call.1
$region0: #{tpu_custom_call.1}
  #allocation0 [shape = 'u32[]', space=smem, size = 0x4, offset = 0x4, fixed_abs, tag = 'smem constant byte address 0x4 - core index']
  #allocation1 [shape = 'u32[144,128]{1,0:T(1,128)}', space=vmem, size = 0x12000, scoped, tag = 'internal scratch']
  #allocation2 [shape = 'f32[8,32]{1,0:T(8,128)}', space=vmem, size = 0x1000, scoped, tag = 'scratch operand']
  %s0 = inlined_call_operand.hbm [shape: f32[16,32], index: 0, kind: input, shape index: {}]
  %s1 = inlined_call_operand.hbm [shape: f32[8,32], index: 1, kind: input, shape index: {}]
  %s2 = inlined_call_operand.vmem [shape: bf16[2,32,96], index: 2, kind: input, shape index: {}]
  %s3 = inlined_call_operand.vmem [shape: bf16[2,32,32], index: 3, kind: input, shape index: {}]
  %s4 = inlined_call_operand.vmem [shape: bf16[2,32,64], index: 4, kind: input, shape index: {}]
  %s5 = inlined_call_operand.vmem [shape: f32[2,1,64], index: 5, kind: input, shape index: {}]
  %s6 = inlined_call_operand.vmem [shape: bf16[2,64,32], index: 6, kind: input, shape index: {}]
  %s7 = inlined_call_operand.vmem [shape: f32[2,1,32], index: 7, kind: input, shape index: {}]
  %s8 = inlined_call_operand.hbm [shape: f32[16,32], index: 8, kind: output, shape index: {}]
  %s9 = sld [smem:[#allocation0]]
  $region81: #{tpu_custom_call.1} parent=0
    _
  %s11 = ssub.s32 1, %s9
  %s12 = scalar_select 0, %s11, %s9
  $region1: #{tpu_custom_call.1} parent=0
    #allocation3 [shape = 'u8[8192]{0}', space=vmem, size = 0x2000, scoped, tag = 'input window, operand 0']
    #allocation4 [shape = 's32[2]{0}', space=sflag, size = 0x8, scoped, tag = 'scoped memory for tpu_custom_call.1']
    #allocation5 [shape = 's32[2]{0}', space=sflag, size = 0x8, scoped, tag = 'scoped memory for tpu_custom_call.1']
    #allocation6 [shape = 'u8[4096]{0}', space=vmem, size = 0x1000, scoped, tag = 'input window, operand 1, single buffered']
    #allocation7 [shape = 's32[1]{0}', space=sflag, size = 0x4, scoped, tag = 'scoped memory for tpu_custom_call.1']
    #allocation8 [shape = 'u8[8192]{0}', space=vmem, size = 0x2000, scoped, tag = 'output window, operand 0']
    %13 = vsyncpa [#allocation4], 0
    %s14 = scalar_lea.sflag [#allocation4], 1
    %15 = vsyncpa %s14, 0
    %16 = vsyncpa [#allocation7], 0
    %17 = vsyncpa [#allocation5], 0
    %s18 = scalar_lea.sflag [#allocation5], 1
    %19 = vsyncpa %s18, 0
    loop: start=0, step=1, limit=6
    $region2: #{tpu_custom_call.1} parent=1 // loop_pre_header
      _
    $region3: #{tpu_custom_call.1} parent=1 // loop_header
      %s21 = sphi 0, %s25
      %p22 = scmp.ge.s32.totalorder %s21, 6
      %s28 = sphi 0, %s40
      %s29 = sphi 0, %s36
      %s30 = sphi 0, %s28
      %s31 = sphi 0, %s29
      %s32 = sphi 0, %s30
      %s33 = sphi 0, %s31
      %s43 = sphi 0, %s45
      %s46 = sphi 0, %s43
      %s47 = sphi 0, %s46
      %s63 = sphi 0, %s47
      %s67 = sphi 0, %s67
      %s69 = sphi 0, %s67
      %s70 = sphi 0, %s69
      %s84 = sphi 0, %s70
      %s90 = sphi 0, %s92
      %s93 = sphi 0, %s90
      %s94 = sphi 0, %s93
      %s110 = sphi 0, %s94
      %s116 = sphi 0, %s118
      %s119 = sphi 0, %s116
      %s120 = sphi 0, %s119
      %s136 = sphi 0, %s120
      %s142 = sphi 0, %s144
      %s145 = sphi 0, %s142
      %s146 = sphi 0, %s145
      %s162 = sphi 0, %s146
      %s168 = sphi 0, %s170
      %s171 = sphi 0, %s168
      %s172 = sphi 0, %s171
      %s188 = sphi 0, %s172
      %s194 = sphi 0, %s196
      %s197 = sphi 0, %s194
      %s198 = sphi 0, %s197
      %s214 = sphi 0, %s198
      %s220 = sphi 0, %s222
      %s223 = sphi 0, %s220
      %s224 = sphi 0, %s223
      %s240 = sphi 0, %s224
      %s246 = sphi 0, %s248
      %s249 = sphi 0, %s246
      %s250 = sphi 0, %s249
      %s266 = sphi 0, %s250
    $region4: #{tpu_custom_call.1} parent=1 // loop_header_branch
      %24 = sbr.rel (%p22) target = $region8
    $region5: #{tpu_custom_call.1} parent=1 // loop_body
      %s26 = ssub.s32 %s21, 1
      %s27 = ssub.s32 %s21, 2
      %s34 = sadd.s32 1, %s29
      %p35 = scmp.ge.s32.totalorder %s34, 2
      %s36 = scalar_select %p35, 0, %s34
      %s37 = sadd.s32 1, %s28
      %s38 = scalar_select %p35, %s37, %s28
      %p39 = scmp.ge.s32.totalorder %s38, 2
      %s40 = scalar_select %p39, 0, %s38
      %s41 = ssub.s32 %s28, %s40
      %p42 = scmp.eq.s32.totalorder %s41, 0
      %s44 = sadd.s32 %s43, 1
      %s45 = scalar_select %p42, %s43, %s44
      %p48 = pneg %p42
      %p49 = scmp.eq.s32.totalorder %s21, 3
      %p50 = por %p48, %p49
      %p51 = scmp.ne.s32.totalorder %s43, %s46
      %p52 = scmp.eq.s32.totalorder %s21, 0
      %p53 = por %p51, %p52
      %p54 = scmp.ne.s32.totalorder %s43, %s46
      %p55 = scmp.eq.s32.totalorder %s26, 3
      %p56 = por %p54, %p55
      %p57 = scmp.ne.s32.totalorder %s46, %s47
      %p58 = scmp.eq.s32.totalorder %s26, 0
      %p59 = por %p57, %p58
      %p60 = scmp.ne.s32.totalorder %s46, %s47
      %p61 = scmp.eq.s32.totalorder %s27, 3
      %p62 = por %p60, %p61
      %p64 = scmp.ne.s32.totalorder %s47, %s63
      %p65 = scmp.eq.s32.totalorder %s27, 0
      %p66 = por %p64, %p65
      %s68 = sadd.s32 %s67, 1
      %p71 = scmp.eq.s32.totalorder %s21, 3
      %p72 = scmp.ne.s32.totalorder %s67, %s69
      %p73 = scmp.eq.s32.totalorder %s21, 0
      %p74 = por %p72, %p73
      %p75 = scmp.ne.s32.totalorder %s67, %s69
      %p76 = scmp.eq.s32.totalorder %s26, 3
      %p77 = por %p75, %p76
      %p78 = scmp.ne.s32.totalorder %s69, %s70
      %p79 = scmp.eq.s32.totalorder %s26, 0
      %p80 = por %p78, %p79
      %p81 = scmp.ne.s32.totalorder %s69, %s70
      %p82 = scmp.eq.s32.totalorder %s27, 3
      %p83 = por %p81, %p82
      %p85 = scmp.ne.s32.totalorder %s70, %s84
      %p86 = scmp.eq.s32.totalorder %s27, 0
      %p87 = por %p85, %p86
      %s88 = ssub.s32 %s29, %s36
      %p89 = scmp.eq.s32.totalorder %s88, 0
      %s91 = sadd.s32 %s90, 1
      %s92 = scalar_select %p89, %s90, %s91
      %p95 = pneg %p89
      %p96 = scmp.eq.s32.totalorder %s21, 3
      %p97 = por %p95, %p96
      %p98 = scmp.ne.s32.totalorder %s90, %s93
      %p99 = scmp.eq.s32.totalorder %s21, 0
      %p100 = por %p98, %p99
      %p101 = scmp.ne.s32.totalorder %s90, %s93
      %p102 = scmp.eq.s32.totalorder %s26, 3
      %p103 = por %p101, %p102
      %p104 = scmp.ne.s32.totalorder %s93, %s94
      %p105 = scmp.eq.s32.totalorder %s26, 0
      %p106 = por %p104, %p105
      %p107 = scmp.ne.s32.totalorder %s93, %s94
      %p108 = scmp.eq.s32.totalorder %s27, 3
      %p109 = por %p107, %p108
      %p111 = scmp.ne.s32.totalorder %s94, %s110
      %p112 = scmp.eq.s32.totalorder %s27, 0
      %p113 = por %p111, %p112
      %s114 = ssub.s32 %s29, %s36
      %p115 = scmp.eq.s32.totalorder %s114, 0
      %s117 = sadd.s32 %s116, 1
      %s118 = scalar_select %p115, %s116, %s117
      %p121 = pneg %p115
      %p122 = scmp.eq.s32.totalorder %s21, 3
      %p123 = por %p121, %p122
      %p124 = scmp.ne.s32.totalorder %s116, %s119
      %p125 = scmp.eq.s32.totalorder %s21, 0
      %p126 = por %p124, %p125
      %p127 = scmp.ne.s32.totalorder %s116, %s119
      %p128 = scmp.eq.s32.totalorder %s26, 3
      %p129 = por %p127, %p128
      %p130 = scmp.ne.s32.totalorder %s119, %s120
      %p131 = scmp.eq.s32.totalorder %s26, 0
      %p132 = por %p130, %p131
      %p133 = scmp.ne.s32.totalorder %s119, %s120
      %p134 = scmp.eq.s32.totalorder %s27, 3
      %p135 = por %p133, %p134
      %p137 = scmp.ne.s32.totalorder %s120, %s136
      %p138 = scmp.eq.s32.totalorder %s27, 0
      %p139 = por %p137, %p138
      %s140 = ssub.s32 %s29, %s36
      %p141 = scmp.eq.s32.totalorder %s140, 0
      %s143 = sadd.s32 %s142, 1
      %s144 = scalar_select %p141, %s142, %s143
      %p147 = pneg %p141
      %p148 = scmp.eq.s32.totalorder %s21, 3
      %p149 = por %p147, %p148
      %p150 = scmp.ne.s32.totalorder %s142, %s145
      %p151 = scmp.eq.s32.totalorder %s21, 0
      %p152 = por %p150, %p151
      %p153 = scmp.ne.s32.totalorder %s142, %s145
      %p154 = scmp.eq.s32.totalorder %s26, 3
      %p155 = por %p153, %p154
      %p156 = scmp.ne.s32.totalorder %s145, %s146
      %p157 = scmp.eq.s32.totalorder %s26, 0
      %p158 = por %p156, %p157
      %p159 = scmp.ne.s32.totalorder %s145, %s146
      %p160 = scmp.eq.s32.totalorder %s27, 3
      %p161 = por %p159, %p160
      %p163 = scmp.ne.s32.totalorder %s146, %s162
      %p164 = scmp.eq.s32.totalorder %s27, 0
      %p165 = por %p163, %p164
      %s166 = ssub.s32 %s29, %s36
      %p167 = scmp.eq.s32.totalorder %s166, 0
      %s169 = sadd.s32 %s168, 1
      %s170 = scalar_select %p167, %s168, %s169
      %p173 = pneg %p167
      %p174 = scmp.eq.s32.totalorder %s21, 3
      %p175 = por %p173, %p174
      %p176 = scmp.ne.s32.totalorder %s168, %s171
      %p177 = scmp.eq.s32.totalorder %s21, 0
      %p178 = por %p176, %p177
      %p179 = scmp.ne.s32.totalorder %s168, %s171
      %p180 = scmp.eq.s32.totalorder %s26, 3
      %p181 = por %p179, %p180
      %p182 = scmp.ne.s32.totalorder %s171, %s172
      %p183 = scmp.eq.s32.totalorder %s26, 0
      %p184 = por %p182, %p183
      %p185 = scmp.ne.s32.totalorder %s171, %s172
      %p186 = scmp.eq.s32.totalorder %s27, 3
      %p187 = por %p185, %p186
      %p189 = scmp.ne.s32.totalorder %s172, %s188
      %p190 = scmp.eq.s32.totalorder %s27, 0
      %p191 = por %p189, %p190
      %s192 = ssub.s32 %s29, %s36
      %p193 = scmp.eq.s32.totalorder %s192, 0
      %s195 = sadd.s32 %s194, 1
      %s196 = scalar_select %p193, %s194, %s195
      %p199 = pneg %p193
      %p200 = scmp.eq.s32.totalorder %s21, 3
      %p201 = por %p199, %p200
      %p202 = scmp.ne.s32.totalorder %s194, %s197
      %p203 = scmp.eq.s32.totalorder %s21, 0
      %p204 = por %p202, %p203
      %p205 = scmp.ne.s32.totalorder %s194, %s197
      %p206 = scmp.eq.s32.totalorder %s26, 3
      %p207 = por %p205, %p206
      %p208 = scmp.ne.s32.totalorder %s197, %s198
      %p209 = scmp.eq.s32.totalorder %s26, 0
      %p210 = por %p208, %p209
      %p211 = scmp.ne.s32.totalorder %s197, %s198
      %p212 = scmp.eq.s32.totalorder %s27, 3
      %p213 = por %p211, %p212
      %p215 = scmp.ne.s32.totalorder %s198, %s214
      %p216 = scmp.eq.s32.totalorder %s27, 0
      %p217 = por %p215, %p216
      %s218 = ssub.s32 %s29, %s36
      %p219 = scmp.eq.s32.totalorder %s218, 0
      %s221 = sadd.s32 %s220, 1
      %s222 = scalar_select %p219, %s220, %s221
      %p225 = pneg %p219
      %p226 = scmp.eq.s32.totalorder %s21, 3
      %p227 = por %p225, %p226
      %p228 = scmp.ne.s32.totalorder %s220, %s223
      %p229 = scmp.eq.s32.totalorder %s21, 0
      %p230 = por %p228, %p229
      %p231 = scmp.ne.s32.totalorder %s220, %s223
      %p232 = scmp.eq.s32.totalorder %s26, 3
      %p233 = por %p231, %p232
      %p234 = scmp.ne.s32.totalorder %s223, %s224
      %p235 = scmp.eq.s32.totalorder %s26, 0
      %p236 = por %p234, %p235
      %p237 = scmp.ne.s32.totalorder %s223, %s224
      %p238 = scmp.eq.s32.totalorder %s27, 3
      %p239 = por %p237, %p238
      %p241 = scmp.ne.s32.totalorder %s224, %s240
      %p242 = scmp.eq.s32.totalorder %s27, 0
      %p243 = por %p241, %p242
      %s244 = ssub.s32 %s28, %s40
      %p245 = scmp.eq.s32.totalorder %s244, 0
      %s247 = sadd.s32 %s246, 1
      %s248 = scalar_select %p245, %s246, %s247
      %p251 = pneg %p245
      %p252 = scmp.eq.s32.totalorder %s21, 3
      %p253 = por %p251, %p252
      %p254 = scmp.ne.s32.totalorder %s246, %s249
      %p255 = scmp.eq.s32.totalorder %s21, 0
      %p256 = por %p254, %p255
      %p257 = scmp.ne.s32.totalorder %s246, %s249
      %p258 = scmp.eq.s32.totalorder %s26, 3
      %p259 = por %p257, %p258
      %p260 = scmp.ne.s32.totalorder %s249, %s250
      %p261 = scmp.eq.s32.totalorder %s26, 0
      %p262 = por %p260, %p261
      %p263 = scmp.ne.s32.totalorder %s249, %s250
      %p264 = scmp.eq.s32.totalorder %s27, 3
      %p265 = por %p263, %p264
      %p267 = scmp.ne.s32.totalorder %s250, %s266
      %p268 = scmp.eq.s32.totalorder %s27, 0
      %p269 = por %p267, %p268
      %p270 = scmp.le.s32.totalorder 1, %s21
      %p271 = scmp.lt.s32.totalorder %s21, 5
      %p272 = pnand %p270, %p271
      %p273 = pneg %p272
      // Predicated region
      $region9: #{tpu_custom_call.1} parent=5 // pred_check
        _
      $region10: #{tpu_custom_call.1} parent=5 // pred_check_branch
        %275 = sbr.rel (%p272) target = $region12
      $region11: #{tpu_custom_call.1} parent=5 // pred_region
        %s276 = ssub.s32 %s21, 1
        // Predicated region
        $region13: #{tpu_custom_call.1} parent=11 // pred_check
          %p277 = pneg %p80
        $region14: #{tpu_custom_call.1} parent=11 // pred_check_branch
          %279 = sbr.rel (%p277) target = $region16
        $region15: #{tpu_custom_call.1} parent=11 // pred_region
          %s281 = ssub.s32 128, 128
          %282 = vsyncadd [#allocation7], %s281
          %s284 = sshll.u32 [#allocation6], 4
          %s285 = int_to_ptr.vmem [resolvable:$true] %s284
          %287 = dma.hbm_to_vmem [thread:$0]  %s1, 128, %s285, [#allocation7]
        $region16: #{tpu_custom_call.1} parent=11 // pred_fallthru
          _
      $region12: #{tpu_custom_call.1} parent=5 // pred_fallthru
        _
      %p288 = scmp.lt.s32.totalorder %s21, 4
      // Predicated region
      $region17: #{tpu_custom_call.1} parent=5 // pred_check
        %p289 = pneg %p288
      $region18: #{tpu_custom_call.1} parent=5 // pred_check_branch
        %291 = sbr.rel (%p289) target = $region20
      $region19: #{tpu_custom_call.1} parent=5 // pred_region
        // Predicated region
        $region21: #{tpu_custom_call.1} parent=19 // pred_check
          %p292 = pneg %p53
        $region22: #{tpu_custom_call.1} parent=19 // pred_check_branch
          %294 = sbr.rel (%p292) target = $region24
        $region23: #{tpu_custom_call.1} parent=19 // pred_region
          %s295 = sand.u32 %s43, 1
          %s296 = scalar_lea.sflag [#allocation4], %s295
          %s297 = sand.u32 %s43, 1
          %s298 = smul.addr %s297, 8
          %s299 = scalar_lea.vmem [#allocation3], %s298
          %s301 = ssub.s32 128, 128
          %302 = vsyncadd %s296, %s301
          %s303 = smul.addr %s28, 128
          %s304 = scalar_lea.hbm %s0, %s303
          %s306 = sshll.u32 %s299, 4
          %s307 = int_to_ptr.vmem [resolvable:$true] %s306
          %309 = dma.hbm_to_vmem [thread:$0]  %s304, 128, %s307, %s296
        $region24: #{tpu_custom_call.1} parent=19 // pred_fallthru
          _
        // Predicated region
        $region25: #{tpu_custom_call.1} parent=19 // pred_check
          %p310 = pneg %p100
        $region26: #{tpu_custom_call.1} parent=19 // pred_check_branch
          %312 = sbr.rel (%p310) target = $region28
        $region27: #{tpu_custom_call.1} parent=19 // pred_region
          %p313 = scmp.lt.s32.totalorder %s29, 1
          %s314 = scalar_select %p313, %s29, 1
          %s315 = smul.addr %s314, 4
          %s316 = smul.addr %s315, 4
          %s317 = scalar_lea.vmem %s2, %s316
        $region28: #{tpu_custom_call.1} parent=19 // pred_fallthru
          _
        // Predicated region
        $region29: #{tpu_custom_call.1} parent=19 // pred_check
          %p318 = pneg %p126
        $region30: #{tpu_custom_call.1} parent=19 // pred_check_branch
          %320 = sbr.rel (%p318) target = $region32
        $region31: #{tpu_custom_call.1} parent=19 // pred_region
          %p321 = scmp.lt.s32.totalorder %s29, 1
          %s322 = scalar_select %p321, %s29, 1
          %s323 = smul.addr %s322, 4
          %s324 = smul.addr %s323, 4
          %s325 = scalar_lea.vmem %s3, %s324
        $region32: #{tpu_custom_call.1} parent=19 // pred_fallthru
          _
        // Predicated region
        $region33: #{tpu_custom_call.1} parent=19 // pred_check
          %p326 = pneg %p152
        $region34: #{tpu_custom_call.1} parent=19 // pred_check_branch
          %328 = sbr.rel (%p326) target = $region36
        $region35: #{tpu_custom_call.1} parent=19 // pred_region
          %p329 = scmp.lt.s32.totalorder %s29, 1
          %s330 = scalar_select %p329, %s29, 1
          %s331 = smul.addr %s330, 4
          %s332 = smul.addr %s331, 4
          %s333 = scalar_lea.vmem %s4, %s332
        $region36: #{tpu_custom_call.1} parent=19 // pred_fallthru
          _
        // Predicated region
        $region37: #{tpu_custom_call.1} parent=19 // pred_check
          %p334 = pneg %p178
        $region38: #{tpu_custom_call.1} parent=19 // pred_check_branch
          %336 = sbr.rel (%p334) target = $region40
        $region39: #{tpu_custom_call.1} parent=19 // pred_region
          %p337 = scmp.lt.s32.totalorder %s29, 1
          %s338 = scalar_select %p337, %s29, 1
          %s339 = scalar_lea.vmem %s5, %s338
        $region40: #{tpu_custom_call.1} parent=19 // pred_fallthru
          _
        // Predicated region
        $region41: #{tpu_custom_call.1} parent=19 // pred_check
          %p340 = pneg %p204
        $region42: #{tpu_custom_call.1} parent=19 // pred_check_branch
          %342 = sbr.rel (%p340) target = $region44
        $region43: #{tpu_custom_call.1} parent=19 // pred_region
          %p343 = scmp.lt.s32.totalorder %s29, 1
          %s344 = scalar_select %p343, %s29, 1
          %s345 = smul.addr %s344, 8
          %s346 = smul.addr %s345, 4
          %s347 = scalar_lea.vmem %s6, %s346
        $region44: #{tpu_custom_call.1} parent=19 // pred_fallthru
          _
        // Predicated region
        $region45: #{tpu_custom_call.1} parent=19 // pred_check
          %p348 = pneg %p230
        $region46: #{tpu_custom_call.1} parent=19 // pred_check_branch
          %350 = sbr.rel (%p348) target = $region48
        $region47: #{tpu_custom_call.1} parent=19 // pred_region
          %p351 = scmp.lt.s32.totalorder %s29, 1
          %s352 = scalar_select %p351, %s29, 1
          %s353 = scalar_lea.vmem %s7, %s352
        $region48: #{tpu_custom_call.1} parent=19 // pred_fallthru
          _
      $region20: #{tpu_custom_call.1} parent=5 // pred_fallthru
        _
      %p354 = scmp.le.s32.totalorder 1, %s21
      %p355 = scmp.lt.s32.totalorder %s21, 5
      %p356 = pnand %p354, %p355
      %p357 = pneg %p356
      // Predicated region
      $region49: #{tpu_custom_call.1} parent=5 // pred_check
        _
      $region50: #{tpu_custom_call.1} parent=5 // pred_check_branch
        %359 = sbr.rel (%p356) target = $region52
      $region51: #{tpu_custom_call.1} parent=5 // pred_region
        %s360 = ssub.s32 %s21, 1
        %s361 = sand.u32 %s46, 1
        %s362 = scalar_lea.sflag [#allocation4], %s361
        %s363 = sand.u32 %s46, 1
        %s364 = smul.addr %s363, 8
        %s365 = scalar_lea.vmem [#allocation3], %s364
        // Predicated region
        $region53: #{tpu_custom_call.1} parent=51 // pred_check
          %p366 = pneg %p59
        $region54: #{tpu_custom_call.1} parent=51 // pred_check_branch
          %368 = sbr.rel (%p366) target = $region56
        $region55: #{tpu_custom_call.1} parent=51 // pred_region
          %369 = dma.done %s362, 128
        $region56: #{tpu_custom_call.1} parent=51 // pred_fallthru
          _
        // Predicated region
        $region57: #{tpu_custom_call.1} parent=51 // pred_check
          %p370 = pneg %p80
        $region58: #{tpu_custom_call.1} parent=51 // pred_check_branch
          %372 = sbr.rel (%p370) target = $region60
        $region59: #{tpu_custom_call.1} parent=51 // pred_region
          %373 = dma.done [#allocation7], 128
        $region60: #{tpu_custom_call.1} parent=51 // pred_fallthru
          _
        %s374 = sand.u32 %s46, 1
        %s375 = scalar_lea.sflag [#allocation4], %s374
        %s376 = sand.u32 %s46, 1
        %s377 = smul.addr %s376, 8
        %s378 = scalar_lea.vmem [#allocation3], %s377
        %p379 = pneg %p59
        %p380 = pneg %p56
        %p381 = pneg %p80
        %p382 = pneg %p77
        %p383 = scmp.lt.s32.totalorder %s31, 1
        %s384 = scalar_select %p383, %s31, 1
        %s385 = smul.addr %s384, 4
        %s386 = smul.addr %s385, 4
        %s387 = scalar_lea.vmem %s2, %s386
        %p388 = pneg %p106
        %p389 = pneg %p103
        %p390 = scmp.lt.s32.totalorder %s31, 1
        %s391 = scalar_select %p390, %s31, 1
        %s392 = smul.addr %s391, 4
        %s393 = smul.addr %s392, 4
        %s394 = scalar_lea.vmem %s3, %s393
        %p395 = pneg %p132
        %p396 = pneg %p129
        %p397 = scmp.lt.s32.totalorder %s31, 1
        %s398 = scalar_select %p397, %s31, 1
        %s399 = smul.addr %s398, 4
        %s400 = smul.addr %s399, 4
        %s401 = scalar_lea.vmem %s4, %s400
        %p402 = pneg %p158
        %p403 = pneg %p155
        %p404 = scmp.lt.s32.totalorder %s31, 1
        %s405 = scalar_select %p404, %s31, 1
        %s406 = scalar_lea.vmem %s5, %s405
        %p407 = pneg %p184
        %p408 = pneg %p181
        %p409 = scmp.lt.s32.totalorder %s31, 1
        %s410 = scalar_select %p409, %s31, 1
        %s411 = smul.addr %s410, 8
        %s412 = smul.addr %s411, 4
        %s413 = scalar_lea.vmem %s6, %s412
        %p414 = pneg %p210
        %p415 = pneg %p207
        %p416 = scmp.lt.s32.totalorder %s31, 1
        %s417 = scalar_select %p416, %s31, 1
        %s418 = scalar_lea.vmem %s7, %s417
        %p419 = pneg %p236
        %p420 = pneg %p233
        %p421 = pneg %p262
        %p422 = pneg %p259
        %s423 = sand.u32 %s249, 1
        %s424 = scalar_lea.sflag [#allocation5], %s423
        %s425 = sand.u32 %s249, 1
        %s426 = smul.addr %s425, 8
        %s427 = scalar_lea.vmem [#allocation8], %s426
        %p428 = scmp.lt.s32.totalorder %s31, 1
        %s429 = scalar_select %p428, %s31, 1
        %s430 = smul.addr %s429, 4
        %s431 = smul.addr %s430, 4
        %s432 = scalar_lea.vmem %s2, %s431
        %p433 = scmp.lt.s32.totalorder %s31, 1
        %s434 = scalar_select %p433, %s31, 1
        %s435 = smul.addr %s434, 4
        %s436 = smul.addr %s435, 4
        %s437 = scalar_lea.vmem %s3, %s436
        %p438 = scmp.lt.s32.totalorder %s31, 1
        %s439 = scalar_select %p438, %s31, 1
        %s440 = smul.addr %s439, 4
        %s441 = smul.addr %s440, 4
        %s442 = scalar_lea.vmem %s4, %s441
        %p443 = scmp.lt.s32.totalorder %s31, 1
        %s444 = scalar_select %p443, %s31, 1
        %s445 = scalar_lea.vmem %s5, %s444
        %p446 = scmp.lt.s32.totalorder %s31, 1
        %s447 = scalar_select %p446, %s31, 1
        %s448 = smul.addr %s447, 8
        %s449 = smul.addr %s448, 4
        %s450 = scalar_lea.vmem %s6, %s449
        %p451 = scmp.lt.s32.totalorder %s31, 1
        %s452 = scalar_select %p451, %s31, 1
        %s453 = scalar_lea.vmem %s7, %s452
        %p455 = scmp.eq.s32.totalorder %s31, 0
        // Predicated region
        $region61: #{tpu_custom_call.1} parent=51 // pred_check
          %p456 = pneg %p455
        $region62: #{tpu_custom_call.1} parent=51 // pred_check_branch
          %458 = sbr.rel (%p456) target = $region64
        $region63: #{tpu_custom_call.1} parent=51 // pred_region
          %v459 = vld [vmem:[%s365] sm:$0xff]
          %v460 = vld [vmem:[#allocation6] sm:$0xff]
          %v461 = vadd.f32 %v459, %v460
          %vm462 = vcmask 261120
          %463 = vst.msk [vmem:[#allocation2] sm:$0xff] %vm462, %v461
        $region64: #{tpu_custom_call.1} parent=51 // pred_fallthru
          _
        %v464 = vld [vmem:[#allocation2] sm:$0xff]
        %v465 = vpack.c.bf16 %v464, %v464
        %v466 = vld [vmem:[%s432] sm:$0xf]
        %v467 = vld [vmem:[%s432 + $0x4] sm:$0xf]
        %v468 = vld [vmem:[%s432 + $0x8] sm:$0xf]
        %v469 = vld [vmem:[%s432 + $0xc] sm:$0xf]
        %v474 = vunpack.c.l.b16 %v466
        %v475 = vunpack.c.l.b16 %v467
        %v476 = vunpack.c.l.b16 %v468
        %v477 = vunpack.c.l.b16 %v469
        %v478 = vpack.c.b16 %v475, %v474
        %v479 = vpack.c.b16 %v477, %v476
        %vm482 = vcmask 261120
        %v484 = vsel %vm482, %v465, 0
        %486 = vmatprep.subr.bf16.mxu0 0
        %487 = vmatpush1.bf16.msra.mxu0 %v478
        %488 = vmatprep.subr.bf16.mxu0 0
        %489 = vmatpush1.bf16.msra.mxu0 %v479
        %490 = vmatprep.subr.bf16.mxu0 0
        %491 = vmatpush1.bf16.msra.mxu0 0
        %492 = vmatprep.subr.bf16.mxu0 0
        %493 = vmatpush1.bf16.msra.mxu0 0
        %494 = vmatprep.subr.bf16.mxu0 0
        %495 = vmatpush1.bf16.msra.mxu0 0
        %496 = vmatprep.subr.bf16.mxu0 0
        %497 = vmatpush1.bf16.msra.mxu0 0
        %498 = vmatprep.subr.bf16.mxu0 0
        %499 = vmatpush1.bf16.msra.mxu0 0
        %500 = vmatprep.subr.bf16.mxu0 0
        %501 = vmatpush1.bf16.msra.mxu0 0
        %502 = vmatprep.subr.bf16.mxu0 0
        %503 = vmatpush1.bf16.msra.mxu0 0
        %504 = vmatprep.subr.bf16.mxu0 0
        %505 = vmatpush1.bf16.msra.mxu0 0
        %506 = vmatprep.subr.bf16.mxu0 0
        %507 = vmatpush1.bf16.msra.mxu0 0
        %508 = vmatprep.subr.bf16.mxu0 0
        %509 = vmatpush1.bf16.msra.mxu0 0
        %510 = vmatprep.subr.bf16.mxu0 0
        %511 = vmatpush1.bf16.msra.mxu0 0
        %512 = vmatprep.subr.bf16.mxu0 0
        %513 = vmatpush1.bf16.msra.mxu0 0
        %514 = vmatprep.subr.bf16.mxu0 0
        %515 = vmatpush1.bf16.msra.mxu0 0
        %516 = vmatprep.subr.bf16.mxu0 0
        %517 = vmatpush1.bf16.msra.mxu0 0
        %518 = vmatprep.mubr.bf16.mxu0 0
        %519 = vmatmul.mubr.bf16.gmra.mrb[0].mxu0 %v484
        %v520 = vpop.f32.mrb[0].mxu0
        %v521 = vadd.f32 0.0, %v520
        %v522 = vpop.f32.mrb[0].mxu0
        %v523 = vpop.f32.mrb[0].mxu0
        %v524 = vpop.f32.mrb[0].mxu0
        %525 = vdwg.mxu0
        %v526 = vpack.c.bf16 %v521, %v521
        %528 = vrot.lane.b32.xlu0 %v526, 120
        %v529 = vpop.permute.xlu0 %528
        %530 = vrot.lane.b32.xlu0 %v526, 112
        %v531 = vpop.permute.xlu0 %530
        %532 = vrot.lane.b32.xlu0 %v526, 104
        %v533 = vpop.permute.xlu0 %532
        %v535 = vunpack.c.l.s4 1983009808
        %v536 = vunpack.c.0.s8 %v535
        %v537 = vlaneseq
        %v538 = vshrl.u32 %v537, 7
        %v539 = vsub.s32 %v536, %v538
        %v540 = vrot.slane %v526, %v539
        %v543 = vunpack.c.l.s4 1983009808
        %v544 = vunpack.c.0.s8 %v543
        %v545 = vlaneseq
        %v546 = vshrl.u32 %v545, 7
        %v547 = vsub.s32 %v544, %v546
        %v548 = vrot.slane %v531, %v547
        %v549 = vcombine.low %v540, %v548
        %v550 = vcombine.high %v540, %v548
        %v552 = vunpack.c.l.s4 1934713408
        %v553 = vunpack.c.0.s8 %v552
        %v554 = vlaneseq
        %v555 = vshrl.u32 %v554, 7
        %v556 = vsub.s32 %v553, %v555
        %v557 = vrot.slane %v549, %v556
        %v559 = vunpack.c.l.s4 1934713408
        %v560 = vunpack.c.0.s8 %v559
        %v561 = vlaneseq
        %v562 = vshrl.u32 %v561, 7
        %v563 = vsub.s32 %v560, %v562
        %v564 = vrot.slane %v550, %v563
        %v565 = vcombine.high %v557, 0
        %v566 = vcombine.high %v564, 0
        %v569 = vunpack.c.l.s4 1983009808
        %v570 = vunpack.c.0.s8 %v569
        %v571 = vlaneseq
        %v572 = vshrl.u32 %v571, 7
        %v573 = vsub.s32 %v570, %v572
        %v574 = vrot.slane %v529, %v573
        %v577 = vunpack.c.l.s4 1983009808
        %v578 = vunpack.c.0.s8 %v577
        %v579 = vlaneseq
        %v580 = vshrl.u32 %v579, 7
        %v581 = vsub.s32 %v578, %v580
        %v582 = vrot.slane %v533, %v581
        %v583 = vcombine.low %v574, %v582
        %v584 = vcombine.high %v574, %v582
        %v586 = vunpack.c.l.s4 1934713408
        %v587 = vunpack.c.0.s8 %v586
        %v588 = vlaneseq
        %v589 = vshrl.u32 %v588, 7
        %v590 = vsub.s32 %v587, %v589
        %v591 = vrot.slane %v583, %v590
        %v593 = vunpack.c.l.s4 1934713408
        %v594 = vunpack.c.0.s8 %v593
        %v595 = vlaneseq
        %v596 = vshrl.u32 %v595, 7
        %v597 = vsub.s32 %v594, %v596
        %v598 = vrot.slane %v584, %v597
        %v599 = vcombine.high %v591, 0
        %v600 = vcombine.high %v598, 0
        %v603 = vpack.i.b16 %v591, %v557
        %v605 = vshrl.u32 %v557, 16
        %v606 = vshrl.u32 %v591, 16
        %v607 = vpack.i.b16 %v606, %v605
        %v611 = vpack.i.b16 %v599, %v565
        %v613 = vshrl.u32 %v565, 16
        %v614 = vshrl.u32 %v599, 16
        %v615 = vpack.i.b16 %v614, %v613
        %v619 = vpack.i.b16 %v598, %v564
        %v621 = vshrl.u32 %v564, 16
        %v622 = vshrl.u32 %v598, 16
        %v623 = vpack.i.b16 %v622, %v621
        %v627 = vpack.i.b16 %v600, %v566
        %v629 = vshrl.u32 %v566, 16
        %v630 = vshrl.u32 %v600, 16
        %v631 = vpack.i.b16 %v630, %v629
        %v633 = vcombine.low %v603, %v619
        %v635 = vunpack.c.l.s4 1983009808
        %v636 = vunpack.c.0.s8 %v635
        %v637 = vlaneseq
        %v638 = vshrl.u32 %v637, 7
        %v639 = vsub.s32 %v636, %v638
        %v640 = vrot.slane %v633, %v639
        %v641 = vcombine.low %v611, %v627
        %v643 = vunpack.c.l.s4 1983009808
        %v644 = vunpack.c.0.s8 %v643
        %v645 = vlaneseq
        %v646 = vshrl.u32 %v645, 7
        %v647 = vsub.s32 %v644, %v646
        %v648 = vrot.slane %v641, %v647
        %v649 = vcombine.low %v640, %v648
        %v651 = vunpack.c.l.s4 1934713408
        %v652 = vunpack.c.0.s8 %v651
        %v653 = vlaneseq
        %v654 = vshrl.u32 %v653, 7
        %v655 = vsub.s32 %v652, %v654
        %v656 = vrot.slane %v649, %v655
        %v657 = vcombine.high %v656, 0
        %v658 = vcombine.low %v607, %v623
        %v660 = vunpack.c.l.s4 1983009808
        %v661 = vunpack.c.0.s8 %v660
        %v662 = vlaneseq
        %v663 = vshrl.u32 %v662, 7
        %v664 = vsub.s32 %v661, %v663
        %v665 = vrot.slane %v658, %v664
        %v666 = vcombine.low %v615, %v631
        %v668 = vunpack.c.l.s4 1983009808
        %v669 = vunpack.c.0.s8 %v668
        %v670 = vlaneseq
        %v671 = vshrl.u32 %v670, 7
        %v672 = vsub.s32 %v669, %v671
        %v673 = vrot.slane %v666, %v672
        %v674 = vcombine.low %v665, %v673
        %v676 = vunpack.c.l.s4 1934713408
        %v677 = vunpack.c.0.s8 %v676
        %v678 = vlaneseq
        %v679 = vshrl.u32 %v678, 7
        %v680 = vsub.s32 %v677, %v679
        %v681 = vrot.slane %v674, %v680
        %v682 = vcombine.high %v681, 0
        %v685 = vpack.i.b16 %v681, %v656
        %v686 = vshrl.u32 %v656, 16
        %v687 = vshrl.u32 %v681, 16
        %v688 = vpack.i.b16 %v687, %v686
        %v691 = vpack.i.b16 %v682, %v657
        %v692 = vshrl.u32 %v657, 16
        %v693 = vshrl.u32 %v682, 16
        %v694 = vpack.i.b16 %v693, %v692
        %695 = vrot.lane.b32.xlu0 %v526, 96
        %v696 = vpop.permute.xlu0 %695
        %697 = vrot.lane.b32.xlu0 %v529, 96
        %v698 = vpop.permute.xlu0 %697
        %699 = vrot.lane.b32.xlu0 %v531, 96
        %v700 = vpop.permute.xlu0 %699
        %701 = vrot.lane.b32.xlu0 %v533, 96
        %v702 = vpop.permute.xlu0 %701
        %v705 = vunpack.c.l.s4 1983009808
        %v706 = vunpack.c.0.s8 %v705
        %v707 = vlaneseq
        %v708 = vshrl.u32 %v707, 7
        %v709 = vsub.s32 %v706, %v708
        %v710 = vrot.slane %v696, %v709
        %v713 = vunpack.c.l.s4 1983009808
        %v714 = vunpack.c.0.s8 %v713
        %v715 = vlaneseq
        %v716 = vshrl.u32 %v715, 7
        %v717 = vsub.s32 %v714, %v716
        %v718 = vrot.slane %v700, %v717
        %v719 = vcombine.low %v710, %v718
        %v720 = vcombine.high %v710, %v718
        %v722 = vunpack.c.l.s4 1934713408
        %v723 = vunpack.c.0.s8 %v722
        %v724 = vlaneseq
        %v725 = vshrl.u32 %v724, 7
        %v726 = vsub.s32 %v723, %v725
        %v727 = vrot.slane %v719, %v726
        %v729 = vunpack.c.l.s4 1934713408
        %v730 = vunpack.c.0.s8 %v729
        %v731 = vlaneseq
        %v732 = vshrl.u32 %v731, 7
        %v733 = vsub.s32 %v730, %v732
        %v734 = vrot.slane %v720, %v733
        %v735 = vcombine.high %v727, 0
        %v736 = vcombine.high %v734, 0
        %v739 = vunpack.c.l.s4 1983009808
        %v740 = vunpack.c.0.s8 %v739
        %v741 = vlaneseq
        %v742 = vshrl.u32 %v741, 7
        %v743 = vsub.s32 %v740, %v742
        %v744 = vrot.slane %v698, %v743
        %v747 = vunpack.c.l.s4 1983009808
        %v748 = vunpack.c.0.s8 %v747
        %v749 = vlaneseq
        %v750 = vshrl.u32 %v749, 7
        %v751 = vsub.s32 %v748, %v750
        %v752 = vrot.slane %v702, %v751
        %v753 = vcombine.low %v744, %v752
        %v754 = vcombine.high %v744, %v752
        %v756 = vunpack.c.l.s4 1934713408
        %v757 = vunpack.c.0.s8 %v756
        %v758 = vlaneseq
        %v759 = vshrl.u32 %v758, 7
        %v760 = vsub.s32 %v757, %v759
        %v761 = vrot.slane %v753, %v760
        %v763 = vunpack.c.l.s4 1934713408
        %v764 = vunpack.c.0.s8 %v763
        %v765 = vlaneseq
        %v766 = vshrl.u32 %v765, 7
        %v767 = vsub.s32 %v764, %v766
        %v768 = vrot.slane %v754, %v767
        %v769 = vcombine.high %v761, 0
        %v770 = vcombine.high %v768, 0
        %v773 = vpack.i.b16 %v761, %v727
        %v775 = vshrl.u32 %v727, 16
        %v776 = vshrl.u32 %v761, 16
        %v777 = vpack.i.b16 %v776, %v775
        %v781 = vpack.i.b16 %v769, %v735
        %v783 = vshrl.u32 %v735, 16
        %v784 = vshrl.u32 %v769, 16
        %v785 = vpack.i.b16 %v784, %v783
        %v789 = vpack.i.b16 %v768, %v734
        %v791 = vshrl.u32 %v734, 16
        %v792 = vshrl.u32 %v768, 16
        %v793 = vpack.i.b16 %v792, %v791
        %v797 = vpack.i.b16 %v770, %v736
        %v799 = vshrl.u32 %v736, 16
        %v800 = vshrl.u32 %v770, 16
        %v801 = vpack.i.b16 %v800, %v799
        %v803 = vcombine.low %v773, %v789
        %v805 = vunpack.c.l.s4 1983009808
        %v806 = vunpack.c.0.s8 %v805
        %v807 = vlaneseq
        %v808 = vshrl.u32 %v807, 7
        %v809 = vsub.s32 %v806, %v808
        %v810 = vrot.slane %v803, %v809
        %v811 = vcombine.low %v781, %v797
        %v813 = vunpack.c.l.s4 1983009808
        %v814 = vunpack.c.0.s8 %v813
        %v815 = vlaneseq
        %v816 = vshrl.u32 %v815, 7
        %v817 = vsub.s32 %v814, %v816
        %v818 = vrot.slane %v811, %v817
        %v819 = vcombine.low %v810, %v818
        %v821 = vunpack.c.l.s4 1934713408
        %v822 = vunpack.c.0.s8 %v821
        %v823 = vlaneseq
        %v824 = vshrl.u32 %v823, 7
        %v825 = vsub.s32 %v822, %v824
        %v826 = vrot.slane %v819, %v825
        %v827 = vcombine.high %v826, 0
        %v828 = vcombine.low %v777, %v793
        %v830 = vunpack.c.l.s4 1983009808
        %v831 = vunpack.c.0.s8 %v830
        %v832 = vlaneseq
        %v833 = vshrl.u32 %v832, 7
        %v834 = vsub.s32 %v831, %v833
        %v835 = vrot.slane %v828, %v834
        %v836 = vcombine.low %v785, %v801
        %v838 = vunpack.c.l.s4 1983009808
        %v839 = vunpack.c.0.s8 %v838
        %v840 = vlaneseq
        %v841 = vshrl.u32 %v840, 7
        %v842 = vsub.s32 %v839, %v841
        %v843 = vrot.slane %v836, %v842
        %v844 = vcombine.low %v835, %v843
        %v846 = vunpack.c.l.s4 1934713408
        %v847 = vunpack.c.0.s8 %v846
        %v848 = vlaneseq
        %v849 = vshrl.u32 %v848, 7
        %v850 = vsub.s32 %v847, %v849
        %v851 = vrot.slane %v844, %v850
        %v852 = vcombine.high %v851, 0
        %v855 = vpack.i.b16 %v851, %v826
        %v856 = vshrl.u32 %v826, 16
        %v857 = vshrl.u32 %v851, 16
        %v858 = vpack.i.b16 %v857, %v856
        %v861 = vpack.i.b16 %v852, %v827
        %v862 = vshrl.u32 %v827, 16
        %v863 = vshrl.u32 %v852, 16
        %v864 = vpack.i.b16 %v863, %v862
        %865 = vrot.lane.b32.xlu0 %v526, 64
        %v866 = vpop.permute.xlu0 %865
        %867 = vrot.lane.b32.xlu0 %v529, 64
        %v868 = vpop.permute.xlu0 %867
        %869 = vrot.lane.b32.xlu0 %v531, 64
        %v870 = vpop.permute.xlu0 %869
        %871 = vrot.lane.b32.xlu0 %v533, 64
        %v872 = vpop.permute.xlu0 %871
        %v875 = vunpack.c.l.s4 1983009808
        %v876 = vunpack.c.0.s8 %v875
        %v877 = vlaneseq
        %v878 = vshrl.u32 %v877, 7
        %v879 = vsub.s32 %v876, %v878
        %v880 = vrot.slane %v866, %v879
        %v883 = vunpack.c.l.s4 1983009808
        %v884 = vunpack.c.0.s8 %v883
        %v885 = vlaneseq
        %v886 = vshrl.u32 %v885, 7
        %v887 = vsub.s32 %v884, %v886
        %v888 = vrot.slane %v870, %v887
        %v889 = vcombine.low %v880, %v888
        %v890 = vcombine.high %v880, %v888
        %v892 = vunpack.c.l.s4 1934713408
        %v893 = vunpack.c.0.s8 %v892
        %v894 = vlaneseq
        %v895 = vshrl.u32 %v894, 7
        %v896 = vsub.s32 %v893, %v895
        %v897 = vrot.slane %v889, %v896
        %v899 = vunpack.c.l.s4 1934713408
        %v900 = vunpack.c.0.s8 %v899
        %v901 = vlaneseq
        %v902 = vshrl.u32 %v901, 7
        %v903 = vsub.s32 %v900, %v902
        %v904 = vrot.slane %v890, %v903
        %v905 = vcombine.high %v897, 0
        %v906 = vcombine.high %v904, 0
        %v909 = vunpack.c.l.s4 1983009808
        %v910 = vunpack.c.0.s8 %v909
        %v911 = vlaneseq
        %v912 = vshrl.u32 %v911, 7
        %v913 = vsub.s32 %v910, %v912
        %v914 = vrot.slane %v868, %v913
        %v917 = vunpack.c.l.s4 1983009808
        %v918 = vunpack.c.0.s8 %v917
        %v919 = vlaneseq
        %v920 = vshrl.u32 %v919, 7
        %v921 = vsub.s32 %v918, %v920
        %v922 = vrot.slane %v872, %v921
        %v923 = vcombine.low %v914, %v922
        %v924 = vcombine.high %v914, %v922
        %v926 = vunpack.c.l.s4 1934713408
        %v927 = vunpack.c.0.s8 %v926
        %v928 = vlaneseq
        %v929 = vshrl.u32 %v928, 7
        %v930 = vsub.s32 %v927, %v929
        %v931 = vrot.slane %v923, %v930
        %v933 = vunpack.c.l.s4 1934713408
        %v934 = vunpack.c.0.s8 %v933
        %v935 = vlaneseq
        %v936 = vshrl.u32 %v935, 7
        %v937 = vsub.s32 %v934, %v936
        %v938 = vrot.slane %v924, %v937
        %v939 = vcombine.high %v931, 0
        %v940 = vcombine.high %v938, 0
        %v943 = vpack.i.b16 %v931, %v897
        %v945 = vshrl.u32 %v897, 16
        %v946 = vshrl.u32 %v931, 16
        %v947 = vpack.i.b16 %v946, %v945
        %v951 = vpack.i.b16 %v939, %v905
        %v953 = vshrl.u32 %v905, 16
        %v954 = vshrl.u32 %v939, 16
        %v955 = vpack.i.b16 %v954, %v953
        %v959 = vpack.i.b16 %v938, %v904
        %v961 = vshrl.u32 %v904, 16
        %v962 = vshrl.u32 %v938, 16
        %v963 = vpack.i.b16 %v962, %v961
        %v967 = vpack.i.b16 %v940, %v906
        %v969 = vshrl.u32 %v906, 16
        %v970 = vshrl.u32 %v940, 16
        %v971 = vpack.i.b16 %v970, %v969
        %v973 = vcombine.low %v943, %v959
        %v975 = vunpack.c.l.s4 1983009808
        %v976 = vunpack.c.0.s8 %v975
        %v977 = vlaneseq
        %v978 = vshrl.u32 %v977, 7
        %v979 = vsub.s32 %v976, %v978
        %v980 = vrot.slane %v973, %v979
        %v981 = vcombine.low %v951, %v967
        %v983 = vunpack.c.l.s4 1983009808
        %v984 = vunpack.c.0.s8 %v983
        %v985 = vlaneseq
        %v986 = vshrl.u32 %v985, 7
        %v987 = vsub.s32 %v984, %v986
        %v988 = vrot.slane %v981, %v987
        %v989 = vcombine.low %v980, %v988
        %v991 = vunpack.c.l.s4 1934713408
        %v992 = vunpack.c.0.s8 %v991
        %v993 = vlaneseq
        %v994 = vshrl.u32 %v993, 7
        %v995 = vsub.s32 %v992, %v994
        %v996 = vrot.slane %v989, %v995
        %v997 = vcombine.high %v996, 0
        %v998 = vcombine.low %v947, %v963
        %v1000 = vunpack.c.l.s4 1983009808
        %v1001 = vunpack.c.0.s8 %v1000
        %v1002 = vlaneseq
        %v1003 = vshrl.u32 %v1002, 7
        %v1004 = vsub.s32 %v1001, %v1003
        %v1005 = vrot.slane %v998, %v1004
        %v1006 = vcombine.low %v955, %v971
        %v1008 = vunpack.c.l.s4 1983009808
        %v1009 = vunpack.c.0.s8 %v1008
        %v1010 = vlaneseq
        %v1011 = vshrl.u32 %v1010, 7
        %v1012 = vsub.s32 %v1009, %v1011
        %v1013 = vrot.slane %v1006, %v1012
        %v1014 = vcombine.low %v1005, %v1013
        %v1016 = vunpack.c.l.s4 1934713408
        %v1017 = vunpack.c.0.s8 %v1016
        %v1018 = vlaneseq
        %v1019 = vshrl.u32 %v1018, 7
        %v1020 = vsub.s32 %v1017, %v1019
        %v1021 = vrot.slane %v1014, %v1020
        %v1022 = vcombine.high %v1021, 0
        %v1025 = vpack.i.b16 %v1021, %v996
        %v1026 = vshrl.u32 %v996, 16
        %v1027 = vshrl.u32 %v1021, 16
        %v1028 = vpack.i.b16 %v1027, %v1026
        %v1031 = vpack.i.b16 %v1022, %v997
        %v1032 = vshrl.u32 %v997, 16
        %v1033 = vshrl.u32 %v1022, 16
        %v1034 = vpack.i.b16 %v1033, %v1032
        %vm1035 = vcmask 64512
        %v1037 = vsel %vm1035, %v685, 0
        %v1040 = vsel %vm1035, %v855, 0
        %1042 = vmatprep.subr.bf16.mxu0 0
        %1043 = vmatpush1.bf16.xpose.msra.mxu0 %v1040
        %1044 = vmatprep.subr.bf16.mxu0 0
        %1045 = vmatpush1.bf16.xpose.msra.mxu0 0
        %1046 = vmatprep.subr.bf16.mxu0 0
        %1047 = vmatpush1.bf16.xpose.msra.mxu0 0
        %1048 = vmatprep.subr.bf16.mxu0 0
        %1049 = vmatpush1.bf16.xpose.msra.mxu0 0
        %1050 = vmatprep.subr.bf16.mxu0 0
        %1051 = vmatpush1.bf16.xpose.msra.mxu0 0
        %1052 = vmatprep.subr.bf16.mxu0 0
        %1053 = vmatpush1.bf16.xpose.msra.mxu0 0
        %1054 = vmatprep.subr.bf16.mxu0 0
        %1055 = vmatpush1.bf16.xpose.msra.mxu0 0
        %1056 = vmatprep.subr.bf16.mxu0 0
        %1057 = vmatpush1.bf16.xpose.msra.mxu0 0
        %1058 = vmatprep.subr.bf16.mxu0 0
        %1059 = vmatpush1.bf16.xpose.msra.mxu0 0
        %1060 = vmatprep.subr.bf16.mxu0 0
        %1061 = vmatpush1.bf16.xpose.msra.mxu0 0
        %1062 = vmatprep.subr.bf16.mxu0 0
        %1063 = vmatpush1.bf16.xpose.msra.mxu0 0
        %1064 = vmatprep.subr.bf16.mxu0 0
        %1065 = vmatpush1.bf16.xpose.msra.mxu0 0
        %1066 = vmatprep.subr.bf16.mxu0 0
        %1067 = vmatpush1.bf16.xpose.msra.mxu0 0
        %1068 = vmatprep.subr.bf16.mxu0 0
        %1069 = vmatpush1.bf16.xpose.msra.mxu0 0
        %1070 = vmatprep.subr.bf16.mxu0 0
        %1071 = vmatpush1.bf16.xpose.msra.mxu0 0
        %1072 = vmatprep.subr.bf16.mxu0 0
        %1073 = vmatpush1.bf16.xpose.msra.mxu0 0
        %1074 = vmatprep.mubr.bf16.mxu0 0
        %1075 = vmatmul.mubr.bf16.gmra.mrb[0].mxu0 %v1037
        %v1076 = vpop.f32.mrb[0].mxu0
        %v1077 = vadd.f32 0.0, %v1076
        %v1078 = vpop.f32.mrb[0].mxu0
        %v1079 = vpop.f32.mrb[0].mxu0
        %v1080 = vpop.f32.mrb[0].mxu0
        %1081 = vdwg.mxu0
        %v1083 = vsel %vm1035, %v688, 0
        %v1086 = vsel %vm1035, %v858, 0
        %1088 = vmatprep.subr.bf16.mxu0 0
        %1089 = vmatpush1.bf16.xpose.msra.mxu0 %v1086
        %1090 = vmatprep.subr.bf16.mxu0 0
        %1091 = vmatpush1.bf16.xpose.msra.mxu0 0
        %1092 = vmatprep.subr.bf16.mxu0 0
        %1093 = vmatpush1.bf16.xpose.msra.mxu0 0
        %1094 = vmatprep.subr.bf16.mxu0 0
        %1095 = vmatpush1.bf16.xpose.msra.mxu0 0
        %1096 = vmatprep.subr.bf16.mxu0 0
        %1097 = vmatpush1.bf16.xpose.msra.mxu0 0
        %1098 = vmatprep.subr.bf16.mxu0 0
        %1099 = vmatpush1.bf16.xpose.msra.mxu0 0
        %1100 = vmatprep.subr.bf16.mxu0 0
        %1101 = vmatpush1.bf16.xpose.msra.mxu0 0
        %1102 = vmatprep.subr.bf16.mxu0 0
        %1103 = vmatpush1.bf16.xpose.msra.mxu0 0
        %1104 = vmatprep.subr.bf16.mxu0 0
        %1105 = vmatpush1.bf16.xpose.msra.mxu0 0
        %1106 = vmatprep.subr.bf16.mxu0 0
        %1107 = vmatpush1.bf16.xpose.msra.mxu0 0
        %1108 = vmatprep.subr.bf16.mxu0 0
        %1109 = vmatpush1.bf16.xpose.msra.mxu0 0
        %1110 = vmatprep.subr.bf16.mxu0 0
        %1111 = vmatpush1.bf16.xpose.msra.mxu0 0
        %1112 = vmatprep.subr.bf16.mxu0 0
        %1113 = vmatpush1.bf16.xpose.msra.mxu0 0
        %1114 = vmatprep.subr.bf16.mxu0 0
        %1115 = vmatpush1.bf16.xpose.msra.mxu0 0
        %1116 = vmatprep.subr.bf16.mxu0 0
        %1117 = vmatpush1.bf16.xpose.msra.mxu0 0
        %1118 = vmatprep.subr.bf16.mxu0 0
        %1119 = vmatpush1.bf16.xpose.msra.mxu0 0
        %1120 = vmatprep.mubr.bf16.mxu0 0
        %1121 = vmatmul.mubr.bf16.gmra.mrb[0].mxu0 %v1083
        %v1122 = vpop.f32.mrb[0].mxu0
        %v1123 = vadd.f32 0.0, %v1122
        %v1124 = vpop.f32.mrb[0].mxu0
        %v1125 = vpop.f32.mrb[0].mxu0
        %v1126 = vpop.f32.mrb[0].mxu0
        %1127 = vdwg.mxu0
        %v1129 = vsel %vm1035, %v691, 0
        %v1132 = vsel %vm1035, %v861, 0
        %1134 = vmatprep.subr.bf16.mxu0 0
        %1135 = vmatpush1.bf16.xpose.msra.mxu0 %v1132
        %1136 = vmatprep.subr.bf16.mxu0 0
        %1137 = vmatpush1.bf16.xpose.msra.mxu0 0
        %1138 = vmatprep.subr.bf16.mxu0 0
        %1139 = vmatpush1.bf16.xpose.msra.mxu0 0
        %1140 = vmatprep.subr.bf16.mxu0 0
        %1141 = vmatpush1.bf16.xpose.msra.mxu0 0
        %1142 = vmatprep.subr.bf16.mxu0 0
        %1143 = vmatpush1.bf16.xpose.msra.mxu0 0
        %1144 = vmatprep.subr.bf16.mxu0 0
        %1145 = vmatpush1.bf16.xpose.msra.mxu0 0
        %1146 = vmatprep.subr.bf16.mxu0 0
        %1147 = vmatpush1.bf16.xpose.msra.mxu0 0
        %1148 = vmatprep.subr.bf16.mxu0 0
        %1149 = vmatpush1.bf16.xpose.msra.mxu0 0
        %1150 = vmatprep.subr.bf16.mxu0 0
        %1151 = vmatpush1.bf16.xpose.msra.mxu0 0
        %1152 = vmatprep.subr.bf16.mxu0 0
        %1153 = vmatpush1.bf16.xpose.msra.mxu0 0
        %1154 = vmatprep.subr.bf16.mxu0 0
        %1155 = vmatpush1.bf16.xpose.msra.mxu0 0
        %1156 = vmatprep.subr.bf16.mxu0 0
        %1157 = vmatpush1.bf16.xpose.msra.mxu0 0
        %1158 = vmatprep.subr.bf16.mxu0 0
        %1159 = vmatpush1.bf16.xpose.msra.mxu0 0
        %1160 = vmatprep.subr.bf16.mxu0 0
        %1161 = vmatpush1.bf16.xpose.msra.mxu0 0
        %1162 = vmatprep.subr.bf16.mxu0 0
        %1163 = vmatpush1.bf16.xpose.msra.mxu0 0
        %1164 = vmatprep.subr.bf16.mxu0 0
        %1165 = vmatpush1.bf16.xpose.msra.mxu0 0
        %1166 = vmatprep.mubr.bf16.mxu0 0
        %1167 = vmatmul.mubr.bf16.gmra.mrb[0].mxu0 %v1129
        %v1168 = vpop.f32.mrb[0].mxu0
        %v1169 = vadd.f32 0.0, %v1168
        %v1170 = vpop.f32.mrb[0].mxu0
        %v1171 = vpop.f32.mrb[0].mxu0
        %v1172 = vpop.f32.mrb[0].mxu0
        %1173 = vdwg.mxu0
        %v1175 = vsel %vm1035, %v694, 0
        %v1178 = vsel %vm1035, %v864, 0
        %1180 = vmatprep.subr.bf16.mxu0 0
        %1181 = vmatpush1.bf16.xpose.msra.mxu0 %v1178
        %1182 = vmatprep.subr.bf16.mxu0 0
        %1183 = vmatpush1.bf16.xpose.msra.mxu0 0
        %1184 = vmatprep.subr.bf16.mxu0 0
        %1185 = vmatpush1.bf16.xpose.msra.mxu0 0
        %1186 = vmatprep.subr.bf16.mxu0 0
        %1187 = vmatpush1.bf16.xpose.msra.mxu0 0
        %1188 = vmatprep.subr.bf16.mxu0 0
        %1189 = vmatpush1.bf16.xpose.msra.mxu0 0
        %1190 = vmatprep.subr.bf16.mxu0 0
        %1191 = vmatpush1.bf16.xpose.msra.mxu0 0
        %1192 = vmatprep.subr.bf16.mxu0 0
        %1193 = vmatpush1.bf16.xpose.msra.mxu0 0
        %1194 = vmatprep.subr.bf16.mxu0 0
        %1195 = vmatpush1.bf16.xpose.msra.mxu0 0
        %1196 = vmatprep.subr.bf16.mxu0 0
        %1197 = vmatpush1.bf16.xpose.msra.mxu0 0
        %1198 = vmatprep.subr.bf16.mxu0 0
        %1199 = vmatpush1.bf16.xpose.msra.mxu0 0
        %1200 = vmatprep.subr.bf16.mxu0 0
        %1201 = vmatpush1.bf16.xpose.msra.mxu0 0
        %1202 = vmatprep.subr.bf16.mxu0 0
        %1203 = vmatpush1.bf16.xpose.msra.mxu0 0
        %1204 = vmatprep.subr.bf16.mxu0 0
        %1205 = vmatpush1.bf16.xpose.msra.mxu0 0
        %1206 = vmatprep.subr.bf16.mxu0 0
        %1207 = vmatpush1.bf16.xpose.msra.mxu0 0
        %1208 = vmatprep.subr.bf16.mxu0 0
        %1209 = vmatpush1.bf16.xpose.msra.mxu0 0
        %1210 = vmatprep.subr.bf16.mxu0 0
        %1211 = vmatpush1.bf16.xpose.msra.mxu0 0
        %1212 = vmatprep.mubr.bf16.mxu0 0
        %1213 = vmatmul.mubr.bf16.gmra.mrb[0].mxu0 %v1175
        %v1214 = vpop.f32.mrb[0].mxu0
        %v1215 = vadd.f32 0.0, %v1214
        %v1216 = vpop.f32.mrb[0].mxu0
        %v1217 = vpop.f32.mrb[0].mxu0
        %v1218 = vpop.f32.mrb[0].mxu0
        %1219 = vdwg.mxu0
        %v1220 = vlaneseq
        %v1221 = vshrl.u32 %v1220, 7
        %v1222 = vlaneseq
        %v1223 = vand.u32 %v1222, 127
        %vm1224 = vcmp.le.s32.totalorder %v1223, %v1221
        %v1225 = vsel %vm1224, 1, 0
        %vm1226 = vcmp.eq.s32.totalorder %v1225, 1
        %v1227 = vsel %vm1226, %v1077, -1e+10
        %v1228 = vsel %vm1226, %v1123, -1e+10
        %v1229 = vsel %vm1226, %v1169, -1e+10
        %v1230 = vsel %vm1226, %v1215, -1e+10
        %v1231 = vsel %vm1035, %v1227, -inf
        %1232 = vmax.xlane.f32.xlu0 %v1231
        %v1233 = vpop.xlane.xlu0 %1232
        %v1234 = vsel %vm1035, %v1228, -inf
        %1235 = vmax.xlane.f32.xlu0 %v1234
        %v1236 = vpop.xlane.xlu0 %1235
        %v1237 = vsel %vm1035, %v1229, -inf
        %1238 = vmax.xlane.f32.xlu0 %v1237
        %v1239 = vpop.xlane.xlu0 %1238
        %v1240 = vsel %vm1035, %v1230, -inf
        %1241 = vmax.xlane.f32.xlu0 %v1240
        %v1242 = vpop.xlane.xlu0 %1241
        %v1243 = vsub.f32 %v1227, %v1233
        %v1244 = vsub.f32 %v1228, %v1236
        %v1245 = vsub.f32 %v1229, %v1239
        %v1246 = vsub.f32 %v1230, %v1242
        %v1247 = vmul.f32 %v1243, 1.442695
        %v1248 = vpow.pop %v1247
        %v1249 = vmul.f32 %v1244, 1.442695
        %v1250 = vpow.pop %v1249
        %v1251 = vmul.f32 %v1245, 1.442695
        %v1252 = vpow.pop %v1251
        %v1253 = vmul.f32 %v1246, 1.442695
        %v1254 = vpow.pop %v1253
        %v1255 = vsel %vm1035, %v1248, 0.0
        %1256 = vadd.xlane.f32.xlu0 %v1255
        %v1257 = vpop.xlane.xlu0 %1256
        %v1258 = vsel %vm1035, %v1250, 0.0
        %1259 = vadd.xlane.f32.xlu0 %v1258
        %v1260 = vpop.xlane.xlu0 %1259
        %v1261 = vsel %vm1035, %v1252, 0.0
        %1262 = vadd.xlane.f32.xlu0 %v1261
        %v1263 = vpop.xlane.xlu0 %1262
        %v1264 = vsel %vm1035, %v1254, 0.0
        %1265 = vadd.xlane.f32.xlu0 %v1264
        %v1266 = vpop.xlane.xlu0 %1265
        %v1267 = vrcp.pop %v1257
        %v1268 = vrcp.pop %v1260
        %v1269 = vrcp.pop %v1263
        %v1270 = vrcp.pop %v1266
        %v1271 = vmul.f32 %v1248, %v1267
        %v1272 = vmul.f32 %v1250, %v1268
        %v1273 = vmul.f32 %v1252, %v1269
        %v1274 = vmul.f32 %v1254, %v1270
        %v1275 = vpack.c.bf16 %v1271, %v1271
        %v1276 = vpack.c.bf16 %v1272, %v1272
        %v1277 = vpack.c.bf16 %v1273, %v1273
        %v1278 = vpack.c.bf16 %v1274, %v1274
        %v1280 = vsel %vm1035, %v1275, 0
        %vm1282 = vcmask 1043456
        %v1284 = vsel %vm1282, %v1025, 0
        %1286 = vmatprep.subr.bf16.mxu0 0
        %1287 = vmatpush1.bf16.msra.mxu0 %v1284
        %1288 = vmatprep.subr.bf16.mxu0 0
        %1289 = vmatpush1.bf16.msra.mxu0 0
        %1290 = vmatprep.subr.bf16.mxu0 0
        %1291 = vmatpush1.bf16.msra.mxu0 0
        %1292 = vmatprep.subr.bf16.mxu0 0
        %1293 = vmatpush1.bf16.msra.mxu0 0
        %1294 = vmatprep.subr.bf16.mxu0 0
        %1295 = vmatpush1.bf16.msra.mxu0 0
        %1296 = vmatprep.subr.bf16.mxu0 0
        %1297 = vmatpush1.bf16.msra.mxu0 0
        %1298 = vmatprep.subr.bf16.mxu0 0
        %1299 = vmatpush1.bf16.msra.mxu0 0
        %1300 = vmatprep.subr.bf16.mxu0 0
        %1301 = vmatpush1.bf16.msra.mxu0 0
        %1302 = vmatprep.subr.bf16.mxu0 0
        %1303 = vmatpush1.bf16.msra.mxu0 0
        %1304 = vmatprep.subr.bf16.mxu0 0
        %1305 = vmatpush1.bf16.msra.mxu0 0
        %1306 = vmatprep.subr.bf16.mxu0 0
        %1307 = vmatpush1.bf16.msra.mxu0 0
        %1308 = vmatprep.subr.bf16.mxu0 0
        %1309 = vmatpush1.bf16.msra.mxu0 0
        %1310 = vmatprep.subr.bf16.mxu0 0
        %1311 = vmatpush1.bf16.msra.mxu0 0
        %1312 = vmatprep.subr.bf16.mxu0 0
        %1313 = vmatpush1.bf16.msra.mxu0 0
        %1314 = vmatprep.subr.bf16.mxu0 0
        %1315 = vmatpush1.bf16.msra.mxu0 0
        %1316 = vmatprep.subr.bf16.mxu0 0
        %1317 = vmatpush1.bf16.msra.mxu0 0
        %1318 = vmatprep.mubr.bf16.mxu0 0
        %1319 = vmatmul.mubr.bf16.gmra.mrb[0].mxu0 %v1280
        %v1320 = vpop.f32.mrb[0].mxu0
        %v1321 = vadd.f32 0.0, %v1320
        %v1322 = vpop.f32.mrb[0].mxu0
        %v1323 = vpop.f32.mrb[0].mxu0
        %v1324 = vpop.f32.mrb[0].mxu0
        %1325 = vdwg.mxu0
        %v1327 = vsel %vm1035, %v1276, 0
        %v1330 = vsel %vm1282, %v1028, 0
        %1332 = vmatprep.subr.bf16.mxu0 0
        %1333 = vmatpush1.bf16.msra.mxu0 %v1330
        %1334 = vmatprep.subr.bf16.mxu0 0
        %1335 = vmatpush1.bf16.msra.mxu0 0
        %1336 = vmatprep.subr.bf16.mxu0 0
        %1337 = vmatpush1.bf16.msra.mxu0 0
        %1338 = vmatprep.subr.bf16.mxu0 0
        %1339 = vmatpush1.bf16.msra.mxu0 0
        %1340 = vmatprep.subr.bf16.mxu0 0
        %1341 = vmatpush1.bf16.msra.mxu0 0
        %1342 = vmatprep.subr.bf16.mxu0 0
        %1343 = vmatpush1.bf16.msra.mxu0 0
        %1344 = vmatprep.subr.bf16.mxu0 0
        %1345 = vmatpush1.bf16.msra.mxu0 0
        %1346 = vmatprep.subr.bf16.mxu0 0
        %1347 = vmatpush1.bf16.msra.mxu0 0
        %1348 = vmatprep.subr.bf16.mxu0 0
        %1349 = vmatpush1.bf16.msra.mxu0 0
        %1350 = vmatprep.subr.bf16.mxu0 0
        %1351 = vmatpush1.bf16.msra.mxu0 0
        %1352 = vmatprep.subr.bf16.mxu0 0
        %1353 = vmatpush1.bf16.msra.mxu0 0
        %1354 = vmatprep.subr.bf16.mxu0 0
        %1355 = vmatpush1.bf16.msra.mxu0 0
        %1356 = vmatprep.subr.bf16.mxu0 0
        %1357 = vmatpush1.bf16.msra.mxu0 0
        %1358 = vmatprep.subr.bf16.mxu0 0
        %1359 = vmatpush1.bf16.msra.mxu0 0
        %1360 = vmatprep.subr.bf16.mxu0 0
        %1361 = vmatpush1.bf16.msra.mxu0 0
        %1362 = vmatprep.subr.bf16.mxu0 0
        %1363 = vmatpush1.bf16.msra.mxu0 0
        %1364 = vmatprep.mubr.bf16.mxu0 0
        %1365 = vmatmul.mubr.bf16.gmra.mrb[0].mxu0 %v1327
        %v1366 = vpop.f32.mrb[0].mxu0
        %v1367 = vadd.f32 0.0, %v1366
        %v1368 = vpop.f32.mrb[0].mxu0
        %v1369 = vpop.f32.mrb[0].mxu0
        %v1370 = vpop.f32.mrb[0].mxu0
        %1371 = vdwg.mxu0
        %v1373 = vsel %vm1035, %v1277, 0
        %v1376 = vsel %vm1282, %v1031, 0
        %1378 = vmatprep.subr.bf16.mxu0 0
        %1379 = vmatpush1.bf16.msra.mxu0 %v1376
        %1380 = vmatprep.subr.bf16.mxu0 0
        %1381 = vmatpush1.bf16.msra.mxu0 0
        %1382 = vmatprep.subr.bf16.mxu0 0
        %1383 = vmatpush1.bf16.msra.mxu0 0
        %1384 = vmatprep.subr.bf16.mxu0 0
        %1385 = vmatpush1.bf16.msra.mxu0 0
        %1386 = vmatprep.subr.bf16.mxu0 0
        %1387 = vmatpush1.bf16.msra.mxu0 0
        %1388 = vmatprep.subr.bf16.mxu0 0
        %1389 = vmatpush1.bf16.msra.mxu0 0
        %1390 = vmatprep.subr.bf16.mxu0 0
        %1391 = vmatpush1.bf16.msra.mxu0 0
        %1392 = vmatprep.subr.bf16.mxu0 0
        %1393 = vmatpush1.bf16.msra.mxu0 0
        %1394 = vmatprep.subr.bf16.mxu0 0
        %1395 = vmatpush1.bf16.msra.mxu0 0
        %1396 = vmatprep.subr.bf16.mxu0 0
        %1397 = vmatpush1.bf16.msra.mxu0 0
        %1398 = vmatprep.subr.bf16.mxu0 0
        %1399 = vmatpush1.bf16.msra.mxu0 0
        %1400 = vmatprep.subr.bf16.mxu0 0
        %1401 = vmatpush1.bf16.msra.mxu0 0
        %1402 = vmatprep.subr.bf16.mxu0 0
        %1403 = vmatpush1.bf16.msra.mxu0 0
        %1404 = vmatprep.subr.bf16.mxu0 0
        %1405 = vmatpush1.bf16.msra.mxu0 0
        %1406 = vmatprep.subr.bf16.mxu0 0
        %1407 = vmatpush1.bf16.msra.mxu0 0
        %1408 = vmatprep.subr.bf16.mxu0 0
        %1409 = vmatpush1.bf16.msra.mxu0 0
        %1410 = vmatprep.mubr.bf16.mxu0 0
        %1411 = vmatmul.mubr.bf16.gmra.mrb[0].mxu0 %v1373
        %v1412 = vpop.f32.mrb[0].mxu0
        %v1413 = vadd.f32 0.0, %v1412
        %v1414 = vpop.f32.mrb[0].mxu0
        %v1415 = vpop.f32.mrb[0].mxu0
        %v1416 = vpop.f32.mrb[0].mxu0
        %1417 = vdwg.mxu0
        %v1419 = vsel %vm1035, %v1278, 0
        %v1422 = vsel %vm1282, %v1034, 0
        %1424 = vmatprep.subr.bf16.mxu0 0
        %1425 = vmatpush1.bf16.msra.mxu0 %v1422
        %1426 = vmatprep.subr.bf16.mxu0 0
        %1427 = vmatpush1.bf16.msra.mxu0 0
        %1428 = vmatprep.subr.bf16.mxu0 0
        %1429 = vmatpush1.bf16.msra.mxu0 0
        %1430 = vmatprep.subr.bf16.mxu0 0
        %1431 = vmatpush1.bf16.msra.mxu0 0
        %1432 = vmatprep.subr.bf16.mxu0 0
        %1433 = vmatpush1.bf16.msra.mxu0 0
        %1434 = vmatprep.subr.bf16.mxu0 0
        %1435 = vmatpush1.bf16.msra.mxu0 0
        %1436 = vmatprep.subr.bf16.mxu0 0
        %1437 = vmatpush1.bf16.msra.mxu0 0
        %1438 = vmatprep.subr.bf16.mxu0 0
        %1439 = vmatpush1.bf16.msra.mxu0 0
        %1440 = vmatprep.subr.bf16.mxu0 0
        %1441 = vmatpush1.bf16.msra.mxu0 0
        %1442 = vmatprep.subr.bf16.mxu0 0
        %1443 = vmatpush1.bf16.msra.mxu0 0
        %1444 = vmatprep.subr.bf16.mxu0 0
        %1445 = vmatpush1.bf16.msra.mxu0 0
        %1446 = vmatprep.subr.bf16.mxu0 0
        %1447 = vmatpush1.bf16.msra.mxu0 0
        %1448 = vmatprep.subr.bf16.mxu0 0
        %1449 = vmatpush1.bf16.msra.mxu0 0
        %1450 = vmatprep.subr.bf16.mxu0 0
        %1451 = vmatpush1.bf16.msra.mxu0 0
        %1452 = vmatprep.subr.bf16.mxu0 0
        %1453 = vmatpush1.bf16.msra.mxu0 0
        %1454 = vmatprep.subr.bf16.mxu0 0
        %1455 = vmatpush1.bf16.msra.mxu0 0
        %1456 = vmatprep.mubr.bf16.mxu0 0
        %1457 = vmatmul.mubr.bf16.gmra.mrb[0].mxu0 %v1419
        %v1458 = vpop.f32.mrb[0].mxu0
        %v1459 = vadd.f32 0.0, %v1458
        %v1460 = vpop.f32.mrb[0].mxu0
        %v1461 = vpop.f32.mrb[0].mxu0
        %v1462 = vpop.f32.mrb[0].mxu0
        %1463 = vdwg.mxu0
        %v1464 = vpack.c.bf16 %v1321, %v1321
        %v1466 = vunpack.c.l.s4 1983009808
        %v1467 = vunpack.c.0.s8 %v1466
        %v1468 = vlaneseq
        %v1469 = vshrl.u32 %v1468, 7
        %v1470 = vsub.s32 %v1467, %v1469
        %v1471 = vrot.slane %v1464, %v1470
        %v1472 = vpack.c.bf16 %v1413, %v1413
        %v1474 = vunpack.c.l.s4 1983009808
        %v1475 = vunpack.c.0.s8 %v1474
        %v1476 = vlaneseq
        %v1477 = vshrl.u32 %v1476, 7
        %v1478 = vsub.s32 %v1475, %v1477
        %v1479 = vrot.slane %v1472, %v1478
        %v1480 = vcombine.low %v1471, %v1479
        %v1481 = vcombine.high %v1471, %v1479
        %v1483 = vunpack.c.l.s4 1934713408
        %v1484 = vunpack.c.0.s8 %v1483
        %v1485 = vlaneseq
        %v1486 = vshrl.u32 %v1485, 7
        %v1487 = vsub.s32 %v1484, %v1486
        %v1488 = vrot.slane %v1480, %v1487
        %v1490 = vunpack.c.l.s4 1934713408
        %v1491 = vunpack.c.0.s8 %v1490
        %v1492 = vlaneseq
        %v1493 = vshrl.u32 %v1492, 7
        %v1494 = vsub.s32 %v1491, %v1493
        %v1495 = vrot.slane %v1481, %v1494
        %v1496 = vcombine.high %v1488, 0
        %v1497 = vcombine.high %v1495, 0
        %v1498 = vpack.c.bf16 %v1367, %v1367
        %v1500 = vunpack.c.l.s4 1983009808
        %v1501 = vunpack.c.0.s8 %v1500
        %v1502 = vlaneseq
        %v1503 = vshrl.u32 %v1502, 7
        %v1504 = vsub.s32 %v1501, %v1503
        %v1505 = vrot.slane %v1498, %v1504
        %v1506 = vpack.c.bf16 %v1459, %v1459
        %v1508 = vunpack.c.l.s4 1983009808
        %v1509 = vunpack.c.0.s8 %v1508
        %v1510 = vlaneseq
        %v1511 = vshrl.u32 %v1510, 7
        %v1512 = vsub.s32 %v1509, %v1511
        %v1513 = vrot.slane %v1506, %v1512
        %v1514 = vcombine.low %v1505, %v1513
        %v1515 = vcombine.high %v1505, %v1513
        %v1517 = vunpack.c.l.s4 1934713408
        %v1518 = vunpack.c.0.s8 %v1517
        %v1519 = vlaneseq
        %v1520 = vshrl.u32 %v1519, 7
        %v1521 = vsub.s32 %v1518, %v1520
        %v1522 = vrot.slane %v1514, %v1521
        %v1524 = vunpack.c.l.s4 1934713408
        %v1525 = vunpack.c.0.s8 %v1524
        %v1526 = vlaneseq
        %v1527 = vshrl.u32 %v1526, 7
        %v1528 = vsub.s32 %v1525, %v1527
        %v1529 = vrot.slane %v1515, %v1528
        %v1530 = vcombine.high %v1522, 0
        %v1531 = vcombine.high %v1529, 0
        %v1534 = vpack.i.b16 %v1522, %v1488
        %v1536 = vshrl.u32 %v1488, 16
        %v1537 = vshrl.u32 %v1522, 16
        %v1538 = vpack.i.b16 %v1537, %v1536
        %v1542 = vpack.i.b16 %v1530, %v1496
        %v1544 = vshrl.u32 %v1496, 16
        %v1545 = vshrl.u32 %v1530, 16
        %v1546 = vpack.i.b16 %v1545, %v1544
        %v1550 = vpack.i.b16 %v1529, %v1495
        %v1552 = vshrl.u32 %v1495, 16
        %v1553 = vshrl.u32 %v1529, 16
        %v1554 = vpack.i.b16 %v1553, %v1552
        %v1558 = vpack.i.b16 %v1531, %v1497
        %v1560 = vshrl.u32 %v1497, 16
        %v1561 = vshrl.u32 %v1531, 16
        %v1562 = vpack.i.b16 %v1561, %v1560
        %v1564 = vcombine.low %v1534, %v1550
        %v1566 = vunpack.c.l.s4 1983009808
        %v1567 = vunpack.c.0.s8 %v1566
        %v1568 = vlaneseq
        %v1569 = vshrl.u32 %v1568, 7
        %v1570 = vsub.s32 %v1567, %v1569
        %v1571 = vrot.slane %v1564, %v1570
        %v1572 = vcombine.low %v1542, %v1558
        %v1574 = vunpack.c.l.s4 1983009808
        %v1575 = vunpack.c.0.s8 %v1574
        %v1576 = vlaneseq
        %v1577 = vshrl.u32 %v1576, 7
        %v1578 = vsub.s32 %v1575, %v1577
        %v1579 = vrot.slane %v1572, %v1578
        %v1580 = vcombine.low %v1571, %v1579
        %v1582 = vunpack.c.l.s4 1934713408
        %v1583 = vunpack.c.0.s8 %v1582
        %v1584 = vlaneseq
        %v1585 = vshrl.u32 %v1584, 7
        %v1586 = vsub.s32 %v1583, %v1585
        %v1587 = vrot.slane %v1580, %v1586
        %v1588 = vcombine.high %v1587, 0
        %v1589 = vcombine.low %v1538, %v1554
        %v1591 = vunpack.c.l.s4 1983009808
        %v1592 = vunpack.c.0.s8 %v1591
        %v1593 = vlaneseq
        %v1594 = vshrl.u32 %v1593, 7
        %v1595 = vsub.s32 %v1592, %v1594
        %v1596 = vrot.slane %v1589, %v1595
        %v1597 = vcombine.low %v1546, %v1562
        %v1599 = vunpack.c.l.s4 1983009808
        %v1600 = vunpack.c.0.s8 %v1599
        %v1601 = vlaneseq
        %v1602 = vshrl.u32 %v1601, 7
        %v1603 = vsub.s32 %v1600, %v1602
        %v1604 = vrot.slane %v1597, %v1603
        %v1605 = vcombine.low %v1596, %v1604
        %v1607 = vunpack.c.l.s4 1934713408
        %v1608 = vunpack.c.0.s8 %v1607
        %v1609 = vlaneseq
        %v1610 = vshrl.u32 %v1609, 7
        %v1611 = vsub.s32 %v1608, %v1610
        %v1612 = vrot.slane %v1605, %v1611
        %v1613 = vcombine.high %v1612, 0
        %v1616 = vpack.i.b16 %v1612, %v1587
        %v1617 = vshrl.u32 %v1587, 16
        %v1618 = vshrl.u32 %v1612, 16
        %v1619 = vpack.i.b16 %v1618, %v1617
        %v1622 = vpack.i.b16 %v1613, %v1588
        %v1623 = vshrl.u32 %v1588, 16
        %v1624 = vshrl.u32 %v1613, 16
        %v1625 = vpack.i.b16 %v1624, %v1623
        %1626 = vrot.lane.b32.xlu0 %v1619, 8
        %v1627 = vpop.permute.xlu0 %1626
        %1628 = vrot.lane.b32.xlu0 %v1622, 16
        %v1629 = vpop.permute.xlu0 %1628
        %1630 = vrot.lane.b32.xlu0 %v1625, 24
        %v1631 = vpop.permute.xlu0 %1630
        %v1634 = vsel %vm1035, %v1616, %v1627
        %vm1635 = vcmask 130048
        %v1637 = vsel %vm1635, %v1634, %v1629
        %vm1638 = vcmask 195584
        %v1640 = vsel %vm1638, %v1637, %v1631
        %v1641 = vld [vmem:[%s437] sm:$0xf]
        %v1642 = vld [vmem:[%s437 + $0x4] sm:$0xf]
        %v1643 = vld [vmem:[%s437 + $0x8] sm:$0xf]
        %v1644 = vld [vmem:[%s437 + $0xc] sm:$0xf]
        %v1649 = vunpack.c.l.b16 %v1641
        %v1650 = vunpack.c.l.b16 %v1642
        %v1651 = vunpack.c.l.b16 %v1643
        %v1652 = vunpack.c.l.b16 %v1644
        %v1653 = vpack.c.b16 %v1650, %v1649
        %v1654 = vpack.c.b16 %v1652, %v1651
        %v1657 = vsel %vm482, %v1640, 0
        %1659 = vmatprep.subr.bf16.mxu0 0
        %1660 = vmatpush1.bf16.msra.mxu0 %v1653
        %1661 = vmatprep.subr.bf16.mxu0 0
        %1662 = vmatpush1.bf16.msra.mxu0 %v1654
        %1663 = vmatprep.subr.bf16.mxu0 0
        %1664 = vmatpush1.bf16.msra.mxu0 0
        %1665 = vmatprep.subr.bf16.mxu0 0
        %1666 = vmatpush1.bf16.msra.mxu0 0
        %1667 = vmatprep.subr.bf16.mxu0 0
        %1668 = vmatpush1.bf16.msra.mxu0 0
        %1669 = vmatprep.subr.bf16.mxu0 0
        %1670 = vmatpush1.bf16.msra.mxu0 0
        %1671 = vmatprep.subr.bf16.mxu0 0
        %1672 = vmatpush1.bf16.msra.mxu0 0
        %1673 = vmatprep.subr.bf16.mxu0 0
        %1674 = vmatpush1.bf16.msra.mxu0 0
        %1675 = vmatprep.subr.bf16.mxu0 0
        %1676 = vmatpush1.bf16.msra.mxu0 0
        %1677 = vmatprep.subr.bf16.mxu0 0
        %1678 = vmatpush1.bf16.msra.mxu0 0
        %1679 = vmatprep.subr.bf16.mxu0 0
        %1680 = vmatpush1.bf16.msra.mxu0 0
        %1681 = vmatprep.subr.bf16.mxu0 0
        %1682 = vmatpush1.bf16.msra.mxu0 0
        %1683 = vmatprep.subr.bf16.mxu0 0
        %1684 = vmatpush1.bf16.msra.mxu0 0
        %1685 = vmatprep.subr.bf16.mxu0 0
        %1686 = vmatpush1.bf16.msra.mxu0 0
        %1687 = vmatprep.subr.bf16.mxu0 0
        %1688 = vmatpush1.bf16.msra.mxu0 0
        %1689 = vmatprep.subr.bf16.mxu0 0
        %1690 = vmatpush1.bf16.msra.mxu0 0
        %1691 = vmatprep.mubr.bf16.mxu0 0
        %1692 = vmatmul.mubr.bf16.gmra.mrb[0].mxu0 %v1657
        %v1693 = vpop.f32.mrb[0].mxu0
        %v1694 = vadd.f32 0.0, %v1693
        %v1695 = vpop.f32.mrb[0].mxu0
        %v1696 = vpop.f32.mrb[0].mxu0
        %v1697 = vpop.f32.mrb[0].mxu0
        %1698 = vdwg.mxu0
        %v1699 = vadd.f32 %v464, %v1694
        %v1700 = vpack.c.bf16 %v1699, %v1699
        %v1701 = vld [vmem:[%s442] sm:$0xf]
        %v1702 = vld [vmem:[%s442 + $0x4] sm:$0xf]
        %v1703 = vld [vmem:[%s442 + $0x8] sm:$0xf]
        %v1704 = vld [vmem:[%s442 + $0xc] sm:$0xf]
        %v1705 = vld [vmem:[%s445] sm:$0x1]
        %v1707 = vlaneseq
        %v1708 = vshrl.u32 %v1707, 7
        %v1709 = vsub.s32 0, %v1708
        %v1710 = vrot.slane %v1705, %v1709
        %v1716 = vunpack.c.l.b16 %v1701
        %v1717 = vunpack.c.l.b16 %v1702
        %v1718 = vunpack.c.l.b16 %v1703
        %v1719 = vunpack.c.l.b16 %v1704
        %v1720 = vpack.c.b16 %v1717, %v1716
        %v1721 = vpack.c.b16 %v1719, %v1718
        %v1725 = vsel %vm482, %v1700, 0
        %1727 = vmatprep.subr.bf16.mxu0 0
        %1728 = vmatpush1.bf16.msra.mxu0 %v1720
        %1729 = vmatprep.subr.bf16.mxu0 0
        %1730 = vmatpush1.bf16.msra.mxu0 %v1721
        %1731 = vmatprep.subr.bf16.mxu0 0
        %1732 = vmatpush1.bf16.msra.mxu0 0
        %1733 = vmatprep.subr.bf16.mxu0 0
        %1734 = vmatpush1.bf16.msra.mxu0 0
        %1735 = vmatprep.subr.bf16.mxu0 0
        %1736 = vmatpush1.bf16.msra.mxu0 0
        %1737 = vmatprep.subr.bf16.mxu0 0
        %1738 = vmatpush1.bf16.msra.mxu0 0
        %1739 = vmatprep.subr.bf16.mxu0 0
        %1740 = vmatpush1.bf16.msra.mxu0 0
        %1741 = vmatprep.subr.bf16.mxu0 0
        %1742 = vmatpush1.bf16.msra.mxu0 0
        %1743 = vmatprep.subr.bf16.mxu0 0
        %1744 = vmatpush1.bf16.msra.mxu0 0
        %1745 = vmatprep.subr.bf16.mxu0 0
        %1746 = vmatpush1.bf16.msra.mxu0 0
        %1747 = vmatprep.subr.bf16.mxu0 0
        %1748 = vmatpush1.bf16.msra.mxu0 0
        %1749 = vmatprep.subr.bf16.mxu0 0
        %1750 = vmatpush1.bf16.msra.mxu0 0
        %1751 = vmatprep.subr.bf16.mxu0 0
        %1752 = vmatpush1.bf16.msra.mxu0 0
        %1753 = vmatprep.subr.bf16.mxu0 0
        %1754 = vmatpush1.bf16.msra.mxu0 0
        %1755 = vmatprep.subr.bf16.mxu0 0
        %1756 = vmatpush1.bf16.msra.mxu0 0
        %1757 = vmatprep.subr.bf16.mxu0 0
        %1758 = vmatpush1.bf16.msra.mxu0 0
        %1759 = vmatprep.mubr.bf16.mxu0 0
        %1760 = vmatmul.mubr.bf16.gmra.mrb[0].mxu0 %v1725
        %v1761 = vpop.f32.mrb[0].mxu0
        %v1762 = vadd.f32 %v1710, %v1761
        %v1763 = vpop.f32.mrb[0].mxu0
        %v1764 = vpop.f32.mrb[0].mxu0
        %v1765 = vpop.f32.mrb[0].mxu0
        %1766 = vdwg.mxu0
        %v1767 = vmax.f32 %v1762, 0.0
        %v1768 = vpack.c.bf16 %v1767, %v1767
        %v1769 = vld [vmem:[%s450] sm:$0xf]
        %v1770 = vld [vmem:[%s450 + $0x4] sm:$0xf]
        %v1771 = vld [vmem:[%s450 + $0x8] sm:$0xf]
        %v1772 = vld [vmem:[%s450 + $0xc] sm:$0xf]
        %v1773 = vld [vmem:[%s450 + $0x10] sm:$0xf]
        %v1774 = vld [vmem:[%s450 + $0x14] sm:$0xf]
        %v1775 = vld [vmem:[%s450 + $0x18] sm:$0xf]
        %v1776 = vld [vmem:[%s450 + $0x1c] sm:$0xf]
        %v1777 = vld [vmem:[%s453] sm:$0x1]
        %v1779 = vlaneseq
        %v1780 = vshrl.u32 %v1779, 7
        %v1781 = vsub.s32 0, %v1780
        %v1782 = vrot.slane %v1777, %v1781
        %v1792 = vunpack.c.l.b16 %v1769
        %v1793 = vunpack.c.l.b16 %v1770
        %v1794 = vunpack.c.l.b16 %v1771
        %v1795 = vunpack.c.l.b16 %v1772
        %v1796 = vunpack.c.l.b16 %v1773
        %v1797 = vunpack.c.l.b16 %v1774
        %v1798 = vunpack.c.l.b16 %v1775
        %v1799 = vunpack.c.l.b16 %v1776
        %v1800 = vpack.c.b16 %v1793, %v1792
        %v1801 = vpack.c.b16 %v1795, %v1794
        %v1802 = vpack.c.b16 %v1797, %v1796
        %v1803 = vpack.c.b16 %v1799, %v1798
        %vm1808 = vcmask 523264
        %v1810 = vsel %vm1808, %v1768, 0
        %1812 = vmatprep.subr.bf16.mxu0 0
        %1813 = vmatpush1.bf16.msra.mxu0 %v1800
        %1814 = vmatprep.subr.bf16.mxu0 0
        %1815 = vmatpush1.bf16.msra.mxu0 %v1801
        %1816 = vmatprep.subr.bf16.mxu0 0
        %1817 = vmatpush1.bf16.msra.mxu0 %v1802
        %1818 = vmatprep.subr.bf16.mxu0 0
        %1819 = vmatpush1.bf16.msra.mxu0 %v1803
        %1820 = vmatprep.subr.bf16.mxu0 0
        %1821 = vmatpush1.bf16.msra.mxu0 0
        %1822 = vmatprep.subr.bf16.mxu0 0
        %1823 = vmatpush1.bf16.msra.mxu0 0
        %1824 = vmatprep.subr.bf16.mxu0 0
        %1825 = vmatpush1.bf16.msra.mxu0 0
        %1826 = vmatprep.subr.bf16.mxu0 0
        %1827 = vmatpush1.bf16.msra.mxu0 0
        %1828 = vmatprep.subr.bf16.mxu0 0
        %1829 = vmatpush1.bf16.msra.mxu0 0
        %1830 = vmatprep.subr.bf16.mxu0 0
        %1831 = vmatpush1.bf16.msra.mxu0 0
        %1832 = vmatprep.subr.bf16.mxu0 0
        %1833 = vmatpush1.bf16.msra.mxu0 0
        %1834 = vmatprep.subr.bf16.mxu0 0
        %1835 = vmatpush1.bf16.msra.mxu0 0
        %1836 = vmatprep.subr.bf16.mxu0 0
        %1837 = vmatpush1.bf16.msra.mxu0 0
        %1838 = vmatprep.subr.bf16.mxu0 0
        %1839 = vmatpush1.bf16.msra.mxu0 0
        %1840 = vmatprep.subr.bf16.mxu0 0
        %1841 = vmatpush1.bf16.msra.mxu0 0
        %1842 = vmatprep.subr.bf16.mxu0 0
        %1843 = vmatpush1.bf16.msra.mxu0 0
        %1844 = vmatprep.mubr.bf16.mxu0 0
        %1845 = vmatmul.mubr.bf16.gmra.mrb[0].mxu0 %v1810
        %v1846 = vpop.f32.mrb[0].mxu0
        %v1847 = vadd.f32 %v1782, %v1846
        %v1848 = vpop.f32.mrb[0].mxu0
        %v1849 = vpop.f32.mrb[0].mxu0
        %v1850 = vpop.f32.mrb[0].mxu0
        %1851 = vdwg.mxu0
        %v1852 = vadd.f32 %v1699, %v1847
        %1853 = vst.msk [vmem:[#allocation2] sm:$0xff] %vm482, %v1852
        %p1854 = scmp.eq.s32.totalorder %s31, 1
        // Predicated region
        $region65: #{tpu_custom_call.1} parent=51 // pred_check
          %p1855 = pneg %p1854
        $region66: #{tpu_custom_call.1} parent=51 // pred_check_branch
          %1857 = sbr.rel (%p1855) target = $region68
        $region67: #{tpu_custom_call.1} parent=51 // pred_region
          %1858 = vst.msk [vmem:[%s427] sm:$0xff] %vm482, %v1852
        $region68: #{tpu_custom_call.1} parent=51 // pred_fallthru
          _
        %s1859 = sand.u32 %s249, 1
        %s1860 = scalar_lea.sflag [#allocation5], %s1859
        %s1861 = sand.u32 %s249, 1
        %s1862 = smul.addr %s1861, 8
        %s1863 = scalar_lea.vmem [#allocation8], %s1862
        // Predicated region
        $region69: #{tpu_custom_call.1} parent=51 // pred_check
          %p1864 = pneg %p259
        $region70: #{tpu_custom_call.1} parent=51 // pred_check_branch
          %1866 = sbr.rel (%p1864) target = $region72
        $region71: #{tpu_custom_call.1} parent=51 // pred_region
          %s1868 = ssub.s32 128, 128
          %1869 = vsyncadd %s1860, %s1868
          %s1870 = smul.addr %s30, 128
          %s1871 = scalar_lea.hbm %s8, %s1870
          %s1873 = sshll.u32 %s1863, 4
          %s1874 = int_to_ptr.vmem [resolvable:$true] %s1873
          %1876 = dma.vmem_to_hbm [thread:$0]  %s1874, 128, %s1871, %s1860
        $region72: #{tpu_custom_call.1} parent=51 // pred_fallthru
          _
      $region52: #{tpu_custom_call.1} parent=5 // pred_fallthru
        _
      %p1877 = scmp.le.s32.totalorder 2, %s21
      // Predicated region
      $region73: #{tpu_custom_call.1} parent=5 // pred_check
        %p1878 = pneg %p1877
      $region74: #{tpu_custom_call.1} parent=5 // pred_check_branch
        %1880 = sbr.rel (%p1878) target = $region76
      $region75: #{tpu_custom_call.1} parent=5 // pred_region
        %s1881 = ssub.s32 %s21, 2
        // Predicated region
        $region77: #{tpu_custom_call.1} parent=75 // pred_check
          %p1882 = pneg %p265
        $region78: #{tpu_custom_call.1} parent=75 // pred_check_branch
          %1884 = sbr.rel (%p1882) target = $region80
        $region79: #{tpu_custom_call.1} parent=75 // pred_region
          %s1885 = sand.u32 %s250, 1
          %s1886 = scalar_lea.sflag [#allocation5], %s1885
          %s1887 = sand.u32 %s250, 1
          %s1888 = smul.addr %s1887, 8
          %s1889 = scalar_lea.vmem [#allocation8], %s1888
          %1890 = dma.done %s1886, 128
        $region80: #{tpu_custom_call.1} parent=75 // pred_fallthru
          _
      $region76: #{tpu_custom_call.1} parent=5 // pred_fallthru
        _
    $region6: #{tpu_custom_call.1} parent=1 // loop_footer
      %s25 = sadd.s32 1, %s21
    $region7: #{tpu_custom_call.1} parent=1 // loop_footer_branch
      %20 = sbr.rel target = $region3
    $region8: #{tpu_custom_call.1} parent=1 // loop_exit
      _
    %1891 = vsyncpa [#allocation4], 1
    %s1892 = scalar_lea.sflag [#allocation4], 1
    %1893 = vsyncpa %s1892, 1
    %1894 = vsyncpa [#allocation7], 1
    %1895 = vsyncpa [#allocation5], 1
    %s1896 = scalar_lea.sflag [#allocation5], 1
    %1897 = vsyncpa %s1896, 1

</llo_original>
